<compile_context>
chip_gen: v5e
topology: v5e:2x2
jax: 0.10.0
libtpu: 0.0.40
codegen_flags: <defaults>
</compile_context>

<pallas_src>
import functools
import math

import jax
import jax.numpy as jnp
from jax.experimental import pallas as pl
from jax.experimental.pallas import tpu as pltpu

LN_EPS = 1e-12          # torch.nn.LayerNorm default used by BERT
LANE = 128              # TPU lane width
SUBLANE_BF16 = 16       # bf16 sublane packing -> row tiles multiple of 16


# ---------------------------------------------------------------------------
# small helpers
# ---------------------------------------------------------------------------
def _round_up(x, m):
    return (x + m - 1) // m * m


def _pad2(a, rows, cols):
    r, c = a.shape
    if r == rows and c == cols:
        return a
    return jnp.pad(a, ((0, rows - r), (0, cols - c)))


def _pad_row(v, cols):
    n = v.shape[0]
    if n != cols:
        v = jnp.pad(v, (0, cols - n))
    return v.reshape(1, cols)


def _erf(x):
    # Abramowitz & Stegun 7.1.26 (~1.5e-7 abs error): exact-erf GELU fidelity
    # with HF BERT's default "gelu" using only ops guaranteed to lower.
    a1, a2, a3 = 0.254829592, -0.284496736, 1.421413741
    a4, a5, p = -1.453152027, 1.061405429, 0.3275911
    ax = jnp.abs(x)
    t = 1.0 / (1.0 + p * ax)
    poly = ((((a5 * t + a4) * t + a3) * t + a2) * t + a1) * t
    y = 1.0 - poly * jnp.exp(-ax * ax)
    return jnp.where(x < 0.0, -y, y)


def _gelu_erf(x):
    return 0.5 * x * (1.0 + _erf(x * 0.7071067811865476))


def _layernorm(h, gamma, beta, n_real):
    # h's padded lanes are exactly zero by construction; stats over n_real lanes.
    inv_n = 1.0 / n_real
    mean = jnp.sum(h, axis=-1, keepdims=True) * inv_n
    cen = h - mean
    if n_real != h.shape[-1]:
        lane = jax.lax.broadcasted_iota(jnp.int32, h.shape, h.ndim - 1)
        cen = jnp.where(lane < n_real, cen, 0.0)
    var = jnp.sum(cen * cen, axis=-1, keepdims=True) * inv_n
    return cen * jax.lax.rsqrt(var + LN_EPS) * gamma + beta


def _vmem_capacity():
    try:
        return int(pltpu.get_tpu_info().vmem_capacity_bytes)
    except Exception:
        return 128 * 1024 * 1024


_VMEM_CAP = _vmem_capacity()
# 128-MiB parts (v5e/v6e): generous 96 MiB scoped limit + tm=512.
# Smaller parts (v7x 64 MiB): ~5/8 of physical VMEM + tm=256.
_VMEM_LIMIT = int(96 * 2**20) if _VMEM_CAP >= 128 * 2**20 else int((_VMEM_CAP * 5) // 8)
_DEFAULT_TM = 512 if _VMEM_CAP >= 128 * 2**20 else 256


def _mosaic_params(sem=("parallel",)):
    return pltpu.CompilerParams(dimension_semantics=sem,
                                vmem_limit_bytes=_VMEM_LIMIT)


# ---------------------------------------------------------------------------
# single-buffering probe (pl.Buffered(1) for resident weights/params)
# ---------------------------------------------------------------------------
_SINGLE_BUFFER = None


def _probe_single_buffering():
    try:
        def _probe(c_ref, x_ref, o_ref):
            o_ref[...] = x_ref[...] + c_ref[...]

        x = jnp.arange(16 * 128, dtype=jnp.float32).reshape(16, 128)
        c = jnp.ones((8, 128), jnp.float32)
        out = pl.pallas_call(
            _probe,
            out_shape=jax.ShapeDtypeStruct((16, 128), jnp.float32),
            grid_spec=pltpu.PrefetchScalarGridSpec(
                num_scalar_prefetch=0,
                grid=(2,),
                in_specs=[
                    pl.BlockSpec((8, 128), lambda i: (0, 0),
                                 pipeline_mode=pl.Buffered(1)),
                    pl.BlockSpec((8, 128), lambda i: (i, 0)),
                ],
                out_specs=pl.BlockSpec((8, 128), lambda i: (i, 0)),
            ),
        )(c, x)
        return bool(jnp.allclose(out, x + 1.0))
    except Exception:
        return False


def _use_single_buffer():
    global _SINGLE_BUFFER
    if _SINGLE_BUFFER is None:
        _SINGLE_BUFFER = _probe_single_buffering()
    return _SINGLE_BUFFER


def _const_spec(block_shape):
    """BlockSpec for an operand whose block index never changes (weights etc.)."""
    index_map = lambda i: (0,) * len(block_shape)
    if _use_single_buffer():
        return pl.BlockSpec(block_shape, index_map, pipeline_mode=pl.Buffered(1))
    return pl.BlockSpec(block_shape, index_map)


# ---------------------------------------------------------------------------
# kernels
# ---------------------------------------------------------------------------
def _one_head(q, k, v):
    """softmax(q k^T) v for one head; q already carries the 1/sqrt(d) scale."""
    s = jax.lax.dot_general(q, k, (((1,), (1,)), ((), ())),
                            preferred_element_type=jnp.float32)
    s = s - jnp.max(s, axis=-1, keepdims=True)
    e = jnp.exp(s)
    p = e * pl.reciprocal(jnp.sum(e, axis=-1, keepdims=True), approx=True)
    return jnp.dot(p.astype(v.dtype), v, preferred_element_type=jnp.float32)


def _attn_block_kernel(x_ref, wqkv_ref, bqkv_ref, wo_ref, bo_ref, g_ref,
                       beta_ref, o_ref, *, num_heads, head_dim, n_real):
    """Fused QKV proj + multi-head attention + Wo proj + residual + LayerNorm1."""
    x = x_ref[...]                                        # (S, Hp) bf16
    seq, hp = x.shape

    # fused Q/K/V projection; 1/sqrt(d) already folded into the Q columns.
    qkv = jnp.dot(x, wqkv_ref[...], preferred_element_type=jnp.float32)
    qkv = (qkv + bqkv_ref[...]).astype(jnp.bfloat16)      # (S, 3*Hp)

    if head_dim % LANE == 0:
        group_w, heads_per_group = head_dim, 1
    elif LANE % head_dim == 0:
        group_w, heads_per_group = LANE, LANE // head_dim
    else:
        # TODO(synk): support head dims that neither divide nor are a multiple of 128.
        raise NotImplementedError("head_dim must divide 128 or be a multiple of 128")
    n_groups = -(-(num_heads * head_dim) // group_w)

    acc = jnp.zeros((seq, hp), jnp.float32)               # ctx @ Wo accumulator
    for g in range(n_groups):
        base = g * group_w                                # 128-aligned lane offset
        q_g = qkv[:, base:base + group_w]
        k_g = qkv[:, hp + base:hp + base + group_w]
        v_g = qkv[:, 2 * hp + base:2 * hp + base + group_w]
        if heads_per_group == 1:
            ctx_g = _one_head(q_g, k_g, v_g)
        else:
            # Several heads share this 128-lane block; isolate each head with a
            # lane mask (exact: masked lanes contribute zeros to the contraction).
            lane = jax.lax.broadcasted_iota(jnp.int32, (seq, group_w), 1)
            ctx_g = jnp.zeros((seq, group_w), jnp.float32)
            for hh in range(heads_per_group):
                if g * heads_per_group + hh >= num_heads:
                    break
                msk = (lane >= hh * head_dim) & (lane < (hh + 1) * head_dim)
                qh = jnp.where(msk, q_g, jnp.zeros_like(q_g))
                vh = jnp.where(msk, v_g, jnp.zeros_like(v_g))
                ctx_g = ctx_g + _one_head(qh, k_g, vh)
        acc = acc + jnp.dot(ctx_g.astype(jnp.bfloat16),
                            wo_ref[base:base + group_w, :],
                            preferred_element_type=jnp.float32)

    h2 = acc + bo_ref[...] + x.astype(jnp.float32)        # residual add in f32
    o_ref[...] = _layernorm(h2, g_ref[...], beta_ref[...], n_real).astype(o_ref.dtype)


def _ffn_kernel(x_ref, wi_ref, bi_ref, wo2_ref, bo2_ref, g_ref, beta_ref, o_ref,
                *, n_real):
    """Fused Wi + erf-GELU + Wo2 + residual + LayerNorm2 (intermediate stays in VMEM)."""
    x = x_ref[...]                                        # (tm, Hp) bf16
    h1 = jnp.dot(x, wi_ref[...], preferred_element_type=jnp.float32) + bi_ref[...]
    h1 = _gelu_erf(h1).astype(jnp.bfloat16)               # (tm, Ip), never hits HBM
    h2 = jnp.dot(h1, wo2_ref[...], preferred_element_type=jnp.float32)
    h2 = h2 + bo2_ref[...] + x.astype(jnp.float32)        # residual = same tile
    o_ref[...] = _layernorm(h2, g_ref[...], beta_ref[...], n_real).astype(o_ref.dtype)


def _pool_cls_kernel(x_ref, wp_ref, bp_ref, wc_ref, bc_ref, o_ref):
    """Fused pooler (tanh) + classifier."""
    pooled = jnp.tanh(jnp.dot(x_ref[...], wp_ref[...],
                              preferred_element_type=jnp.float32) + bp_ref[...])
    o_ref[...] = jnp.dot(pooled.astype(jnp.bfloat16), wc_ref[...],
                         preferred_element_type=jnp.float32) + bc_ref[...]


# ---------------------------------------------------------------------------
# wrappers
# ---------------------------------------------------------------------------
def _choose_row_tile(m, tm):
    """Largest divisor of m that is a multiple of 16 and <= tm; fallback full."""
    for cand in range(min(tm, m), SUBLANE_BF16 - 1, -1):
        if m % cand == 0 and cand % SUBLANE_BF16 == 0:
            return cand
    return m


def _attention_block(hidden, lp, *, num_heads, head_dim, n_real):
    b, s, hp = hidden.shape
    return pl.pallas_call(
        functools.partial(_attn_block_kernel, num_heads=num_heads,
                          head_dim=head_dim, n_real=n_real),
        out_shape=jax.ShapeDtypeStruct((b, s, hp), jnp.bfloat16),
        grid_spec=pltpu.PrefetchScalarGridSpec(
            num_scalar_prefetch=0,
            grid=(b,),
            in_specs=[
                pl.BlockSpec((None, s, hp), lambda i: (i, 0, 0)),  # hidden / residual
                _const_spec((hp, 3 * hp)),                         # fused QKV weight
                _const_spec((1, 3 * hp)),                          # fused QKV bias
                _const_spec((hp, hp)),                             # Wo
                _const_spec((1, hp)),                              # bo
                _const_spec((1, hp)),                              # LN1 gamma
                _const_spec((1, hp)),                              # LN1 beta
            ],
            out_specs=pl.BlockSpec((None, s, hp), lambda i: (i, 0, 0)),
        ),
        compiler_params=_mosaic_params(),
    )(hidden, lp["Wqkv"], lp["bqkv"], lp["Wo"], lp["bo"], lp["g1"], lp["b1"])


def _ffn_block(x2, lp, *, n_real, tm):
    m, hp = x2.shape
    ip = lp["Wi"].shape[1]
    tm_eff = _choose_row_tile(m, tm)
    return pl.pallas_call(
        functools.partial(_ffn_kernel, n_real=n_real),
        out_shape=jax.ShapeDtypeStruct((m, hp), jnp.bfloat16),
        grid_spec=pltpu.PrefetchScalarGridSpec(
            num_scalar_prefetch=0,
            grid=(m // tm_eff,),
            in_specs=[
                pl.BlockSpec((tm_eff, hp), lambda i: (i, 0)),      # activation/residual
                _const_spec((hp, ip)),                             # Wi
                _const_spec((1, ip)),                              # bi
                _const_spec((ip, hp)),                             # Wo2
                _const_spec((1, hp)),                              # bo2
                _const_spec((1, hp)),                              # LN2 gamma
                _const_spec((1, hp)),                              # LN2 beta
            ],
            out_specs=pl.BlockSpec((tm_eff, hp), lambda i: (i, 0)),
        ),
        compiler_params=_mosaic_params(),
    )(x2, lp["Wi"], lp["bi"], lp["Wo2"], lp["bo2"], lp["g2"], lp["b2"])


def _pool_classify(first_tok, prep):
    b, hp = first_tok.shape
    lpad = prep["Wc"].shape[1]
    return pl.pallas_call(
        _pool_cls_kernel,
        out_shape=jax.ShapeDtypeStruct((b, lpad), jnp.float32),
        grid_spec=pltpu.PrefetchScalarGridSpec(
            num_scalar_prefetch=0,
            grid=(1,),
            in_specs=[
                pl.BlockSpec((b, hp), lambda i: (0, 0)),
                _const_spec((hp, hp)),
                _const_spec((1, hp)),
                _const_spec((hp, lpad)),
                _const_spec((1, lpad)),
            ],
            out_specs=pl.BlockSpec((b, lpad), lambda i: (0, 0)),
        ),
        compiler_params=_mosaic_params(("arbitrary",)),
    )(first_tok, prep["Wp"], prep["bp"], prep["Wc"], prep["bc"])


# ---------------------------------------------------------------------------
# one-time parameter preparation (pad + bf16 cast + scale folding)
# ---------------------------------------------------------------------------
def prep_params(params, *, num_heads):
    h = params["Wp"].shape[0]
    d = h // num_heads
    if not (d % LANE == 0 or LANE % d == 0):
        raise NotImplementedError("attention_head_size must divide 128 or be a multiple")
    scale = 1.0 / math.sqrt(d)
    hp = _round_up(h, LANE)
    layers = []
    for lp in params["layers"]:
        inter = lp["Wi"].shape[1]
        ip = _round_up(inter, LANE)
        wq = _pad2(lp["Wq"] * scale, hp, hp)               # fold 1/sqrt(d) into Q
        wk = _pad2(lp["Wk"], hp, hp)
        wv = _pad2(lp["Wv"], hp, hp)
        bqkv = jnp.concatenate([_pad_row(lp["bq"] * scale, hp),
                                _pad_row(lp["bk"], hp),
                                _pad_row(lp["bv"], hp)], axis=1)
        layers.append(dict(
            Wqkv=jnp.concatenate([wq, wk, wv], axis=1).astype(jnp.bfloat16),
            bqkv=bqkv,
            Wo=_pad2(lp["Wo"], hp, hp).astype(jnp.bfloat16),
            bo=_pad_row(lp["bo"], hp),
            g1=_pad_row(lp["ln1_g"], hp),
            b1=_pad_row(lp["ln1_b"], hp),
            Wi=_pad2(lp["Wi"], hp, ip).astype(jnp.bfloat16),
            bi=_pad_row(lp["bi"], ip),
            Wo2=_pad2(lp["Wo2"], ip, hp).astype(jnp.bfloat16),
            bo2=_pad_row(lp["bo2"], hp),
            g2=_pad_row(lp["ln2_g"], hp),
            b2=_pad_row(lp["ln2_b"], hp),
        ))
    num_labels = params["Wc"].shape[1]
    lpad = _round_up(num_labels, LANE)
    return dict(
        hidden=h, hp=hp, num_heads=num_heads, head_dim=d, num_labels=num_labels,
        layers=layers,
        Wp=_pad2(params["Wp"], hp, hp).astype(jnp.bfloat16),
        bp=_pad_row(params["bp"], hp),
        Wc=_pad2(params["Wc"], hp, lpad).astype(jnp.bfloat16),
        bc=_pad_row(params["bc"], lpad),
    )


def modified_bert_forward(x, prep, *, tm=None):
    """Full ModifiedBertForSequenceClassification forward. x: [B, S, H] f32."""
    if tm is None:
        tm = _DEFAULT_TM
    b, s, h = x.shape
    hp = prep["hp"]
    hidden = jnp.pad(x, ((0, 0), (0, 0), (0, hp - h))).astype(jnp.bfloat16)
    for lp in prep["layers"]:
        hidden = _attention_block(hidden, lp, num_heads=prep["num_heads"],
                                  head_dim=prep["head_dim"], n_real=h)
        hidden = _ffn_block(hidden.reshape(b * s, hp), lp, n_real=h,
                            tm=tm).reshape(b, s, hp)
    logits = _pool_classify(hidden[:, 0, :], prep)
    return logits[:, :prep["num_labels"]]


# ---------------------------------------------------------------------------
# pure-JAX reference (mirrors the same bf16-operand / f32-accumulate path)
# ---------------------------------------------------------------------------
def _ref_ln(h, gamma, beta):
    mean = jnp.mean(h, axis=-1, keepdims=True)
    cen = h - mean
    var = jnp.mean(cen * cen, axis=-1, keepdims=True)
    return cen * jax.lax.rsqrt(var + LN_EPS) * gamma + beta


def _ref_forward(x, params, *, num_heads):
    b, s, h = x.shape
    d = h // num_heads
    scale = 1.0 / math.sqrt(d)
    bf16, f32 = jnp.bfloat16, jnp.float32

    def mm(a, w):
        return jnp.dot(a.astype(bf16), w.astype(bf16), preferred_element_type=f32)

    hidden = x.astype(bf16)
    for lp in params["layers"]:
        x2 = hidden.reshape(b * s, h)
        q = (mm(x2, lp["Wq"] * scale) + lp["bq"] * scale).astype(bf16)
        k = (mm(x2, lp["Wk"]) + lp["bk"]).astype(bf16)
        v = (mm(x2, lp["Wv"]) + lp["bv"]).astype(bf16)

        def heads(t):
            return t.reshape(b, s, num_heads, d).transpose(0, 2, 1, 3)

        sc = jnp.einsum("bhqd,bhkd->bhqk", heads(q), heads(k),
                        preferred_element_type=f32)
        p = jax.nn.softmax(sc, axis=-1)
        ctx = jnp.einsum("bhqk,bhkd->bhqd", p.astype(bf16), heads(v),
                         preferred_element_type=f32)
        ctx = ctx.astype(bf16).transpose(0, 2, 1, 3).reshape(b * s, h)
        a1 = mm(ctx, lp["Wo"]) + lp["bo"] + x2.astype(f32)
        attn = _ref_ln(a1, lp["ln1_g"], lp["ln1_b"]).astype(bf16)
        h1 = _gelu_erf(mm(attn, lp["Wi"]) + lp["bi"]).astype(bf16)
        o1 = mm(h1, lp["Wo2"]) + lp["bo2"] + attn.astype(f32)
        hidden = _ref_ln(o1, lp["ln2_g"], lp["ln2_b"]).astype(bf16).reshape(b, s, h)

    pooled = jnp.tanh(mm(hidden[:, 0, :], params["Wp"]) + params["bp"])
    return mm(pooled, params["Wc"]) + params["bc"]


# ---------------------------------------------------------------------------
# synthetic deterministic parameters + self-test
# ---------------------------------------------------------------------------
def _init_params(key, num_layers, hidden, intermediate, num_labels):
    def nrm(k, shape, scale=0.05):
        return scale * jax.random.normal(k, shape, dtype=jnp.float32)

    keys = iter(jax.random.split(key, num_layers * 16 + 4))
    layers = []
    for _ in range(num_layers):
        layers.append(dict(
            Wq=nrm(next(keys), (hidden, hidden)), bq=nrm(next(keys), (hidden,)),
            Wk=nrm(next(keys), (hidden, hidden)), bk=nrm(next(keys), (hidden,)),
            Wv=nrm(next(keys), (hidden, hidden)), bv=nrm(next(keys), (hidden,)),
            Wo=nrm(next(keys), (hidden, hidden)), bo=nrm(next(keys), (hidden,)),
            ln1_g=1.0 + nrm(next(keys), (hidden,), 0.1),
            ln1_b=nrm(next(keys), (hidden,), 0.1),
            Wi=nrm(next(keys), (hidden, intermediate)),
            bi=nrm(next(keys), (intermediate,)),
            Wo2=nrm(next(keys), (intermediate, hidden)),
            bo2=nrm(next(keys), (hidden,)),
            ln2_g=1.0 + nrm(next(keys), (hidden,), 0.1),
            ln2_b=nrm(next(keys), (hidden,), 0.1),
        ))
    return dict(
        layers=layers,
        Wp=nrm(next(keys), (hidden, hidden)), bp=nrm(next(keys), (hidden,)),
        Wc=nrm(next(keys), (hidden, num_labels)), bc=nrm(next(keys), (num_labels,)),
    )


if __name__ == "__main__":
    # Small BERT-like config: batch=2, seq=8, hidden=32, heads=2, interm=128
    B, S, H, NUM_HEADS, INTER, LAYERS, NUM_LABELS = 2, 8, 32, 2, 128, 2, 2

    key = jax.random.PRNGKey(0)
    k_params, k_x = jax.random.split(key)
    params = _init_params(k_params, LAYERS, H, INTER, NUM_LABELS)
    x = jax.random.normal(k_x, (B, S, H), dtype=jnp.float32)

    _use_single_buffer()                      # run the Buffered(1) probe eagerly once
    prep = prep_params(params, num_heads=NUM_HEADS)   # one-time weight pad/cast
    logits = modified_bert_forward(x, prep)
    logits = jax.block_until_ready(logits)

    ref = _ref_forward(x, params, num_heads=NUM_HEADS)
    assert logits.shape == (B, NUM_LABELS)
    assert jnp.allclose(logits, ref, atol=1e-2, rtol=1e-2), "mismatch vs reference"
    print("KERNEL_OK")
</pallas_src>

<mosaic_0001>
module attributes {stable_mosaic.version = 11 : i64} {
  func.func @_probe(%arg0: i32, %arg1: memref<8x128xf32, #tpu.memory_space<vmem>>, %arg2: memref<8x128xf32, #tpu.memory_space<vmem>>, %arg3: memref<8x128xf32, #tpu.memory_space<vmem>>) attributes {dimension_semantics = [#tpu.dimension_semantics<arbitrary>], iteration_bounds = array<i64: 2>, scalar_prefetch = 0 : i64, scratch_operands = 0 : i64, tpu.core_type = #tpu.core_type<tc>, window_params = [{pipeline_mode = #tpu.pipeline_mode<synchronous>, transform_indices = @transform_0, window_bounds = array<i64: 8, 128>}, {transform_indices = @transform_1, window_bounds = array<i64: 8, 128>}, {transform_indices = @transform_2, window_bounds = array<i64: 8, 128>}]} {
    %c0 = arith.constant 0 : index
    %c0_0 = arith.constant 0 : index
    %0 = vector.load %arg2[%c0, %c0_0] : memref<8x128xf32, #tpu.memory_space<vmem>>, vector<8x128xf32>
    %c0_1 = arith.constant 0 : index
    %c0_2 = arith.constant 0 : index
    %1 = vector.load %arg1[%c0_1, %c0_2] : memref<8x128xf32, #tpu.memory_space<vmem>>, vector<8x128xf32>
    %2 = arith.addf %0, %1 : vector<8x128xf32>
    %c0_3 = arith.constant 0 : index
    %c0_4 = arith.constant 0 : index
    %3 = vector.load %arg3[%c0_3, %c0_4] : memref<8x128xf32, #tpu.memory_space<vmem>>, vector<8x128xf32>
    tpu.vector_store %arg3[%c0_3, %c0_4], %2 {strides = array<i32>} : memref<8x128xf32, #tpu.memory_space<vmem>>, vector<8x128xf32>,
    return
  }
  func.func @transform_0(%arg0: i32) -> (i32, i32) {
    %c0_i32 = arith.constant 0 : i32
    %c0_i32_0 = arith.constant 0 : i32
    %c0_i32_1 = arith.constant 0 : i32
    return %c0_i32, %c0_i32_0 : i32, i32
  }
  func.func @transform_1(%arg0: i32) -> (i32, i32) {
    %c0_i32 = arith.constant 0 : i32
    %c0_i32_0 = arith.constant 0 : i32
    return %arg0, %c0_i32 : i32, i32
  }
  func.func @transform_2(%arg0: i32) -> (i32, i32) {
    %c0_i32 = arith.constant 0 : i32
    %c0_i32_0 = arith.constant 0 : i32
    return %arg0, %c0_i32 : i32, i32
  }
}

module attributes {stable_mosaic.version = 11 : i64} {
  func.func @_attn_block_kernel(%arg0: i32, %arg1: memref<1x8x128xbf16, #tpu.memory_space<vmem>>, %arg2: memref<128x384xbf16, #tpu.memory_space<vmem>>, %arg3: memref<1x384xf32, #tpu.memory_space<vmem>>, %arg4: memref<128x128xbf16, #tpu.memory_space<vmem>>, %arg5: memref<1x128xf32, #tpu.memory_space<vmem>>, %arg6: memref<1x128xf32, #tpu.memory_space<vmem>>, %arg7: memref<1x128xf32, #tpu.memory_space<vmem>>, %arg8: memref<1x8x128xbf16, #tpu.memory_space<vmem>>) attributes {dimension_semantics = [#tpu.dimension_semantics<parallel>], iteration_bounds = array<i64: 2>, scalar_prefetch = 0 : i64, scratch_operands = 0 : i64, tpu.core_type = #tpu.core_type<tc>, window_params = [{transform_indices = @transform_0, window_bounds = array<i64: 1, 8, 128>}, {pipeline_mode = #tpu.pipeline_mode<synchronous>, transform_indices = @transform_1, window_bounds = array<i64: 128, 384>}, {pipeline_mode = #tpu.pipeline_mode<synchronous>, transform_indices = @transform_2, window_bounds = array<i64: 1, 384>}, {pipeline_mode = #tpu.pipeline_mode<synchronous>, transform_indices = @transform_3, window_bounds = array<i64: 128, 128>}, {pipeline_mode = #tpu.pipeline_mode<synchronous>, transform_indices = @transform_4, window_bounds = array<i64: 1, 128>}, {pipeline_mode = #tpu.pipeline_mode<synchronous>, transform_indices = @transform_5, window_bounds = array<i64: 1, 128>}, {pipeline_mode = #tpu.pipeline_mode<synchronous>, transform_indices = @transform_6, window_bounds = array<i64: 1, 128>}, {transform_indices = @transform_7, window_bounds = array<i64: 1, 8, 128>}]} {
    %c0 = arith.constant 0 : index
    %c0_0 = arith.constant 0 : index
    %c0_1 = arith.constant 0 : index
    %0 = vector.load %arg1[%c0, %c0_0, %c0_1] : memref<1x8x128xbf16, #tpu.memory_space<vmem>>, vector<1x8x128xbf16>
    %1 = vector.shape_cast %0 : vector<1x8x128xbf16> to vector<8x128xbf16>
    %c0_2 = arith.constant 0 : index
    %c0_3 = arith.constant 0 : index
    %2 = vector.load %arg2[%c0_2, %c0_3] : memref<128x384xbf16, #tpu.memory_space<vmem>>, vector<128x384xbf16>
    %cst = arith.constant dense<0.000000e+00> : vector<8x384xf32>
    %3 = tpu.matmul %1, %2, %cst {dimension_numbers = #tpu.dot_dimension_numbers<[1], [0], [0], [1], [0, 0, 1, 1], [], []>} : vector<8x128xbf16>, vector<128x384xbf16>, vector<8x384xf32> -> vector<8x384xf32>
    %c0_4 = arith.constant 0 : index
    %c0_5 = arith.constant 0 : index
    %4 = vector.load %arg3[%c0_4, %c0_5] : memref<1x384xf32, #tpu.memory_space<vmem>>, vector<1x384xf32>
    %5 = vector.broadcast %4 : vector<1x384xf32> to vector<8x384xf32>
    %6 = arith.addf %3, %5 : vector<8x384xf32>
    %7 = arith.truncf %6 : vector<8x384xf32> to vector<8x384xbf16>
    %cst_6 = arith.constant 0.000000e+00 : f32
    %8 = vector.broadcast %cst_6 : f32 to vector<8x128xf32>
    %9 = vector.extract_strided_slice %7 {offsets = [0, 0], sizes = [8, 128], strides = [1, 1]} : vector<8x384xbf16> to vector<8x128xbf16>
    %10 = vector.extract_strided_slice %7 {offsets = [0, 128], sizes = [8, 128], strides = [1, 1]} : vector<8x384xbf16> to vector<8x128xbf16>
    %11 = vector.extract_strided_slice %7 {offsets = [0, 256], sizes = [8, 128], strides = [1, 1]} : vector<8x384xbf16> to vector<8x128xbf16>
    %12 = tpu.iota {dimensions = array<i32: 1>} : vector<8x128xi32>
    %cst_7 = arith.constant 0.000000e+00 : f32
    %13 = vector.broadcast %cst_7 : f32 to vector<8x128xf32>
    %c0_i32 = arith.constant 0 : i32
    %14 = vector.broadcast %c0_i32 : i32 to vector<8x128xi32>
    %15 = arith.cmpi sge, %12, %14 : vector<8x128xi32>
    %c16_i32 = arith.constant 16 : i32
    %16 = vector.broadcast %c16_i32 : i32 to vector<8x128xi32>
    %17 = arith.cmpi slt, %12, %16 : vector<8x128xi32>
    %18 = arith.andi %15, %17 : vector<8x128xi1>
    %cst_8 = arith.constant 0.000000e+00 : bf16
    %19 = vector.broadcast %cst_8 : bf16 to vector<8x128xbf16>
    %20 = arith.select %18, %9, %19 : vector<8x128xi1>, vector<8x128xbf16>
    %cst_9 = arith.constant 0.000000e+00 : bf16
    %21 = vector.broadcast %cst_9 : bf16 to vector<8x128xbf16>
    %22 = arith.select %18, %11, %21 : vector<8x128xi1>, vector<8x128xbf16>
    %cst_10 = arith.constant dense<0.000000e+00> : vector<8x8xf32>
    %23 = tpu.matmul %20, %10, %cst_10 {dimension_numbers = #tpu.dot_dimension_numbers<[1], [1], [0], [0], [0, 0, 1, 0], [], []>} : vector<8x128xbf16>, vector<8x128xbf16>, vector<8x8xf32> -> vector<8x8xf32>
    %cst_11 = arith.constant dense<0xFF800000> : vector<8xf32>
    %24 = vector.multi_reduction <maximumf>, %23, %cst_11 [1] : vector<8x8xf32> to vector<8xf32>
    %25 = vector.shape_cast %24 : vector<8xf32> to vector<8x1xf32>
    %26 = vector.broadcast %25 : vector<8x1xf32> to vector<8x8xf32>
    %27 = arith.subf %23, %26 : vector<8x8xf32>
    %28 = math.exp %27 : vector<8x8xf32>
    %cst_12 = arith.constant dense<0.000000e+00> : vector<8xf32>
    %29 = vector.multi_reduction <add>, %28, %cst_12 [1] : vector<8x8xf32> to vector<8xf32>
    %30 = vector.shape_cast %29 : vector<8xf32> to vector<8x1xf32>
    %31 = tpu.reciprocal %30 {approx = true} : vector<8x1xf32> -> vector<8x1xf32>
    %32 = vector.broadcast %31 : vector<8x1xf32> to vector<8x8xf32>
    %33 = arith.mulf %28, %32 : vector<8x8xf32>
    %34 = arith.truncf %33 : vector<8x8xf32> to vector<8x8xbf16>
    %cst_13 = arith.constant dense<0.000000e+00> : vector<8x128xf32>
    %35 = tpu.matmul %34, %22, %cst_13 {dimension_numbers = #tpu.dot_dimension_numbers<[1], [0], [0], [1], [0, 0, 1, 1], [], []>} : vector<8x8xbf16>, vector<8x128xbf16>, vector<8x128xf32> -> vector<8x128xf32>
    %36 = arith.addf %13, %35 : vector<8x128xf32>
    %c16_i32_14 = arith.constant 16 : i32
    %37 = vector.broadcast %c16_i32_14 : i32 to vector<8x128xi32>
    %38 = arith.cmpi sge, %12, %37 : vector<8x128xi32>
    %c32_i32 = arith.constant 32 : i32
    %39 = vector.broadcast %c32_i32 : i32 to vector<8x128xi32>
    %40 = arith.cmpi slt, %12, %39 : vector<8x128xi32>
    %41 = arith.andi %38, %40 : vector<8x128xi1>
    %cst_15 = arith.constant 0.000000e+00 : bf16
    %42 = vector.broadcast %cst_15 : bf16 to vector<8x128xbf16>
    %43 = arith.select %41, %9, %42 : vector<8x128xi1>, vector<8x128xbf16>
    %cst_16 = arith.constant 0.000000e+00 : bf16
    %44 = vector.broadcast %cst_16 : bf16 to vector<8x128xbf16>
    %45 = arith.select %41, %11, %44 : vector<8x128xi1>, vector<8x128xbf16>
    %cst_17 = arith.constant dense<0.000000e+00> : vector<8x8xf32>
    %46 = tpu.matmul %43, %10, %cst_17 {dimension_numbers = #tpu.dot_dimension_numbers<[1], [1], [0], [0], [0, 0, 1, 0], [], []>} : vector<8x128xbf16>, vector<8x128xbf16>, vector<8x8xf32> -> vector<8x8xf32>
    %cst_18 = arith.constant dense<0xFF800000> : vector<8xf32>
    %47 = vector.multi_reduction <maximumf>, %46, %cst_18 [1] : vector<8x8xf32> to vector<8xf32>
    %48 = vector.shape_cast %47 : vector<8xf32> to vector<8x1xf32>
    %49 = vector.broadcast %48 : vector<8x1xf32> to vector<8x8xf32>
    %50 = arith.subf %46, %49 : vector<8x8xf32>
    %51 = math.exp %50 : vector<8x8xf32>
    %cst_19 = arith.constant dense<0.000000e+00> : vector<8xf32>
    %52 = vector.multi_reduction <add>, %51, %cst_19 [1] : vector<8x8xf32> to vector<8xf32>
    %53 = vector.shape_cast %52 : vector<8xf32> to vector<8x1xf32>
    %54 = tpu.reciprocal %53 {approx = true} : vector<8x1xf32> -> vector<8x1xf32>
    %55 = vector.broadcast %54 : vector<8x1xf32> to vector<8x8xf32>
    %56 = arith.mulf %51, %55 : vector<8x8xf32>
    %57 = arith.truncf %56 : vector<8x8xf32> to vector<8x8xbf16>
    %cst_20 = arith.constant dense<0.000000e+00> : vector<8x128xf32>
    %58 = tpu.matmul %57, %45, %cst_20 {dimension_numbers = #tpu.dot_dimension_numbers<[1], [0], [0], [1], [0, 0, 1, 1], [], []>} : vector<8x8xbf16>, vector<8x128xbf16>, vector<8x128xf32> -> vector<8x128xf32>
    %59 = arith.addf %36, %58 : vector<8x128xf32>
    %60 = arith.truncf %59 : vector<8x128xf32> to vector<8x128xbf16>
    %c0_21 = arith.constant 0 : index
    %c0_22 = arith.constant 0 : index
    %61 = vector.load %arg4[%c0_21, %c0_22] : memref<128x128xbf16, #tpu.memory_space<vmem>>, vector<128x128xbf16>
    %cst_23 = arith.constant dense<0.000000e+00> : vector<8x128xf32>
    %62 = tpu.matmul %60, %61, %cst_23 {dimension_numbers = #tpu.dot_dimension_numbers<[1], [0], [0], [1], [0, 0, 1, 1], [], []>} : vector<8x128xbf16>, vector<128x128xbf16>, vector<8x128xf32> -> vector<8x128xf32>
    %63 = arith.addf %8, %62 : vector<8x128xf32>
    %c0_24 = arith.constant 0 : index
    %c0_25 = arith.constant 0 : index
    %64 = vector.load %arg5[%c0_24, %c0_25] : memref<1x128xf32, #tpu.memory_space<vmem>>, vector<1x128xf32>
    %65 = vector.broadcast %64 : vector<1x128xf32> to vector<8x128xf32>
    %66 = arith.addf %63, %65 : vector<8x128xf32>
    %67 = arith.extf %1 : vector<8x128xbf16> to vector<8x128xf32>
    %68 = arith.addf %66, %67 : vector<8x128xf32>
    %c0_26 = arith.constant 0 : index
    %c0_27 = arith.constant 0 : index
    %69 = vector.load %arg6[%c0_26, %c0_27] : memref<1x128xf32, #tpu.memory_space<vmem>>, vector<1x128xf32>
    %c0_28 = arith.constant 0 : index
    %c0_29 = arith.constant 0 : index
    %70 = vector.load %arg7[%c0_28, %c0_29] : memref<1x128xf32, #tpu.memory_space<vmem>>, vector<1x128xf32>
    %cst_30 = arith.constant dense<0.000000e+00> : vector<8xf32>
    %71 = vector.multi_reduction <add>, %68, %cst_30 [1] : vector<8x128xf32> to vector<8xf32>
    %72 = vector.shape_cast %71 : vector<8xf32> to vector<8x1xf32>
    %cst_31 = arith.constant 3.125000e-02 : f32
    %73 = vector.broadcast %cst_31 : f32 to vector<8x1xf32>
    %74 = arith.mulf %72, %73 : vector<8x1xf32>
    %75 = vector.broadcast %74 : vector<8x1xf32> to vector<8x128xf32>
    %76 = arith.subf %68, %75 : vector<8x128xf32>
    %77 = tpu.iota {dimensions = array<i32: 1>} : vector<8x128xi32>
    %c32_i32_32 = arith.constant 32 : i32
    %78 = vector.broadcast %c32_i32_32 : i32 to vector<8x128xi32>
    %79 = arith.cmpi slt, %77, %78 : vector<8x128xi32>
    %cst_33 = arith.constant 0.000000e+00 : f32
    %80 = vector.broadcast %cst_33 : f32 to vector<8x128xf32>
    %81 = arith.select %79, %76, %80 : vector<8x128xi1>, vector<8x128xf32>
    %82 = arith.mulf %81, %81 : vector<8x128xf32>
    %cst_34 = arith.constant dense<0.000000e+00> : vector<8xf32>
    %83 = vector.multi_reduction <add>, %82, %cst_34 [1] : vector<8x128xf32> to vector<8xf32>
    %84 = vector.shape_cast %83 : vector<8xf32> to vector<8x1xf32>
    %cst_35 = arith.constant 3.125000e-02 : f32
    %85 = vector.broadcast %cst_35 : f32 to vector<8x1xf32>
    %86 = arith.mulf %84, %85 : vector<8x1xf32>
    %cst_36 = arith.constant 9.99999996E-13 : f32
    %87 = vector.broadcast %cst_36 : f32 to vector<8x1xf32>
    %88 = arith.addf %86, %87 : vector<8x1xf32>
    %89 = math.rsqrt %88 : vector<8x1xf32>
    %90 = vector.broadcast %89 : vector<8x1xf32> to vector<8x128xf32>
    %91 = arith.mulf %81, %90 : vector<8x128xf32>
    %92 = vector.broadcast %69 : vector<1x128xf32> to vector<8x128xf32>
    %93 = arith.mulf %91, %92 : vector<8x128xf32>
    %94 = vector.broadcast %70 : vector<1x128xf32> to vector<8x128xf32>
    %95 = arith.addf %93, %94 : vector<8x128xf32>
    %96 = arith.truncf %95 : vector<8x128xf32> to vector<8x128xbf16>
    %c0_37 = arith.constant 0 : index
    %c0_38 = arith.constant 0 : index
    %c0_39 = arith.constant 0 : index
    %97 = vector.load %arg8[%c0_37, %c0_38, %c0_39] : memref<1x8x128xbf16, #tpu.memory_space<vmem>>, vector<1x8x128xbf16>
    %98 = vector.shape_cast %97 : vector<1x8x128xbf16> to vector<8x128xbf16>
    %99 = vector.shape_cast %96 : vector<8x128xbf16> to vector<1x8x128xbf16>
    tpu.vector_store %arg8[%c0_37, %c0_38, %c0_39], %99 {strides = array<i32>} : memref<1x8x128xbf16, #tpu.memory_space<vmem>>, vector<1x8x128xbf16>,
    return
  }
  func.func @transform_0(%arg0: i32) -> (i32, i32, i32) {
    %c0_i32 = arith.constant 0 : i32
    %c0_i32_0 = arith.constant 0 : i32
    %c0_i32_1 = arith.constant 0 : i32
    return %arg0, %c0_i32, %c0_i32_0 : i32, i32, i32
  }
  func.func @transform_1(%arg0: i32) -> (i32, i32) {
    %c0_i32 = arith.constant 0 : i32
    %c0_i32_0 = arith.constant 0 : i32
    %c0_i32_1 = arith.constant 0 : i32
    return %c0_i32, %c0_i32_0 : i32, i32
  }
  func.func @transform_2(%arg0: i32) -> (i32, i32) {
    %c0_i32 = arith.constant 0 : i32
    %c0_i32_0 = arith.constant 0 : i32
    %c0_i32_1 = arith.constant 0 : i32
    return %c0_i32, %c0_i32_0 : i32, i32
  }
  func.func @transform_3(%arg0: i32) -> (i32, i32) {
    %c0_i32 = arith.constant 0 : i32
    %c0_i32_0 = arith.constant 0 : i32
    %c0_i32_1 = arith.constant 0 : i32
    return %c0_i32, %c0_i32_0 : i32, i32
  }
  func.func @transform_4(%arg0: i32) -> (i32, i32) {
    %c0_i32 = arith.constant 0 : i32
    %c0_i32_0 = arith.constant 0 : i32
    %c0_i32_1 = arith.constant 0 : i32
    return %c0_i32, %c0_i32_0 : i32, i32
  }
  func.func @transform_5(%arg0: i32) -> (i32, i32) {
    %c0_i32 = arith.constant 0 : i32
    %c0_i32_0 = arith.constant 0 : i32
    %c0_i32_1 = arith.constant 0 : i32
    return %c0_i32, %c0_i32_0 : i32, i32
  }
  func.func @transform_6(%arg0: i32) -> (i32, i32) {
    %c0_i32 = arith.constant 0 : i32
    %c0_i32_0 = arith.constant 0 : i32
    %c0_i32_1 = arith.constant 0 : i32
    return %c0_i32, %c0_i32_0 : i32, i32
  }
  func.func @transform_7(%arg0: i32) -> (i32, i32, i32) {
    %c0_i32 = arith.constant 0 : i32
    %c0_i32_0 = arith.constant 0 : i32
    %c0_i32_1 = arith.constant 0 : i32
    return %arg0, %c0_i32, %c0_i32_0 : i32, i32, i32
  }
}

</mosaic_0001>

<llo_original>
// kernel: tpu_custom_call.1
$region0: #{tpu_custom_call.1}
  #allocation0 [shape = 'u32[]', space=smem, size = 0x4, offset = 0x4, fixed_abs, tag = 'smem constant byte address 0x4 - core index']
  #allocation1 [shape = 'u32[72,128]{1,0:T(1,128)}', space=vmem, size = 0x9000, scoped, tag = 'internal scratch']
  %s0 = inlined_call_operand.hbm [shape: f32[8,128], index: 0, kind: input, shape index: {}]
  %s1 = inlined_call_operand.hbm [shape: f32[16,128], index: 1, kind: input, shape index: {}]
  %s2 = inlined_call_operand.hbm [shape: f32[16,128], index: 2, kind: output, shape index: {}]
  %s3 = sld [smem:[#allocation0]]
  $region49: #{tpu_custom_call.1} parent=0
    _
  %s5 = ssub.s32 1, %s3
  %s6 = scalar_select 0, %s5, %s3
  $region1: #{tpu_custom_call.1} parent=0
    #allocation2 [shape = 'u8[4096]{0}', space=vmem, size = 0x1000, scoped, tag = 'input window, operand 0, single buffered']
    #allocation3 [shape = 's32[2]{0}', space=sflag, size = 0x8, scoped, tag = 'scoped memory for tpu_custom_call.1']
    #allocation4 [shape = 's32[2]{0}', space=sflag, size = 0x8, scoped, tag = 'scoped memory for tpu_custom_call.1']
    #allocation5 [shape = 'u8[8192]{0}', space=vmem, size = 0x2000, scoped, tag = 'input window, operand 1']
    #allocation6 [shape = 's32[2]{0}', space=sflag, size = 0x8, scoped, tag = 'scoped memory for tpu_custom_call.1']
    #allocation7 [shape = 'u8[8192]{0}', space=vmem, size = 0x2000, scoped, tag = 'output window, operand 0']
    %7 = vsyncpa [#allocation3], 0
    %8 = vsyncpa [#allocation6], 0
    %s9 = scalar_lea.sflag [#allocation6], 1
    %10 = vsyncpa %s9, 0
    %11 = vsyncpa [#allocation4], 0
    %s12 = scalar_lea.sflag [#allocation4], 1
    %13 = vsyncpa %s12, 0
    loop: start=0, step=1, limit=4
    $region2: #{tpu_custom_call.1} parent=1 // loop_pre_header
      _
    $region3: #{tpu_custom_call.1} parent=1 // loop_header
      %s15 = sphi 0, %s19
      %p16 = scmp.ge.s32.totalorder %s15, 4
      %s23 = sphi 0, %s23
      %s25 = sphi 0, %s23
      %s26 = sphi 0, %s25
      %s40 = sphi 0, %s26
      %s46 = sphi 0, %s48
      %s49 = sphi 0, %s46
      %s50 = sphi 0, %s49
      %s66 = sphi 0, %s50
      %s72 = sphi 0, %s74
      %s75 = sphi 0, %s72
      %s76 = sphi 0, %s75
      %s92 = sphi 0, %s76
    $region4: #{tpu_custom_call.1} parent=1 // loop_header_branch
      %18 = sbr.rel (%p16) target = $region8
    $region5: #{tpu_custom_call.1} parent=1 // loop_body
      %s20 = ssub.s32 %s15, 1
      %s21 = ssub.s32 %s15, 2
      %s22 = sadd.s32 %s15, 1
      %s24 = sadd.s32 %s23, 1
      %p27 = scmp.eq.s32.totalorder %s15, 1
      %p28 = scmp.ne.s32.totalorder %s23, %s25
      %p29 = scmp.eq.s32.totalorder %s15, 0
      %p30 = por %p28, %p29
      %p31 = scmp.ne.s32.totalorder %s23, %s25
      %p32 = scmp.eq.s32.totalorder %s20, 1
      %p33 = por %p31, %p32
      %p34 = scmp.ne.s32.totalorder %s25, %s26
      %p35 = scmp.eq.s32.totalorder %s20, 0
      %p36 = por %p34, %p35
      %p37 = scmp.ne.s32.totalorder %s25, %s26
      %p38 = scmp.eq.s32.totalorder %s21, 1
      %p39 = por %p37, %p38
      %p41 = scmp.ne.s32.totalorder %s26, %s40
      %p42 = scmp.eq.s32.totalorder %s21, 0
      %p43 = por %p41, %p42
      %s44 = ssub.s32 %s15, %s22
      %p45 = scmp.eq.s32.totalorder %s44, 0
      %s47 = sadd.s32 %s46, 1
      %s48 = scalar_select %p45, %s46, %s47
      %p51 = pneg %p45
      %p52 = scmp.eq.s32.totalorder %s15, 1
      %p53 = por %p51, %p52
      %p54 = scmp.ne.s32.totalorder %s46, %s49
      %p55 = scmp.eq.s32.totalorder %s15, 0
      %p56 = por %p54, %p55
      %p57 = scmp.ne.s32.totalorder %s46, %s49
      %p58 = scmp.eq.s32.totalorder %s20, 1
      %p59 = por %p57, %p58
      %p60 = scmp.ne.s32.totalorder %s49, %s50
      %p61 = scmp.eq.s32.totalorder %s20, 0
      %p62 = por %p60, %p61
      %p63 = scmp.ne.s32.totalorder %s49, %s50
      %p64 = scmp.eq.s32.totalorder %s21, 1
      %p65 = por %p63, %p64
      %p67 = scmp.ne.s32.totalorder %s50, %s66
      %p68 = scmp.eq.s32.totalorder %s21, 0
      %p69 = por %p67, %p68
      %s70 = ssub.s32 %s15, %s22
      %p71 = scmp.eq.s32.totalorder %s70, 0
      %s73 = sadd.s32 %s72, 1
      %s74 = scalar_select %p71, %s72, %s73
      %p77 = pneg %p71
      %p78 = scmp.eq.s32.totalorder %s15, 1
      %p79 = por %p77, %p78
      %p80 = scmp.ne.s32.totalorder %s72, %s75
      %p81 = scmp.eq.s32.totalorder %s15, 0
      %p82 = por %p80, %p81
      %p83 = scmp.ne.s32.totalorder %s72, %s75
      %p84 = scmp.eq.s32.totalorder %s20, 1
      %p85 = por %p83, %p84
      %p86 = scmp.ne.s32.totalorder %s75, %s76
      %p87 = scmp.eq.s32.totalorder %s20, 0
      %p88 = por %p86, %p87
      %p89 = scmp.ne.s32.totalorder %s75, %s76
      %p90 = scmp.eq.s32.totalorder %s21, 1
      %p91 = por %p89, %p90
      %p93 = scmp.ne.s32.totalorder %s76, %s92
      %p94 = scmp.eq.s32.totalorder %s21, 0
      %p95 = por %p93, %p94
      %p96 = scmp.le.s32.totalorder 1, %s15
      %p97 = scmp.lt.s32.totalorder %s15, 3
      %p98 = pnand %p96, %p97
      %p99 = pneg %p98
      // Predicated region
      $region9: #{tpu_custom_call.1} parent=5 // pred_check
        _
      $region10: #{tpu_custom_call.1} parent=5 // pred_check_branch
        %101 = sbr.rel (%p98) target = $region12
      $region11: #{tpu_custom_call.1} parent=5 // pred_region
        %s102 = ssub.s32 %s15, 1
        // Predicated region
        $region13: #{tpu_custom_call.1} parent=11 // pred_check
          %p103 = pneg %p36
        $region14: #{tpu_custom_call.1} parent=11 // pred_check_branch
          %105 = sbr.rel (%p103) target = $region16
        $region15: #{tpu_custom_call.1} parent=11 // pred_region
          %107 = vsyncadd [#allocation3], 0
          %s109 = sshll.u32 %s0, 4
          %s110 = int_to_ptr.hbm [resolvable:$true] %s109
          %s111 = sshll.u32 [#allocation2], 4
          %s112 = int_to_ptr.vmem [resolvable:$true] %s111
          %114 = dma.hbm_to_vmem [thread:$0]  %s110, 128, %s112, [#allocation3]
        $region16: #{tpu_custom_call.1} parent=11 // pred_fallthru
          _
      $region12: #{tpu_custom_call.1} parent=5 // pred_fallthru
        _
      %p115 = scmp.lt.s32.totalorder %s15, 2
      // Predicated region
      $region17: #{tpu_custom_call.1} parent=5 // pred_check
        %p116 = pneg %p115
      $region18: #{tpu_custom_call.1} parent=5 // pred_check_branch
        %118 = sbr.rel (%p116) target = $region20
      $region19: #{tpu_custom_call.1} parent=5 // pred_region
        // Predicated region
        $region21: #{tpu_custom_call.1} parent=19 // pred_check
          %p119 = pneg %p56
        $region22: #{tpu_custom_call.1} parent=19 // pred_check_branch
          %121 = sbr.rel (%p119) target = $region24
        $region23: #{tpu_custom_call.1} parent=19 // pred_region
          %s122 = sand.u32 %s46, 1
          %s123 = scalar_lea.sflag [#allocation6], %s122
          %s124 = sand.u32 %s46, 1
          %s125 = smul.addr %s124, 8
          %s126 = scalar_lea.vmem [#allocation5], %s125
          %128 = vsyncadd %s123, 0
          %s129 = smul.addr %s15, 8
          %s130 = scalar_lea.hbm %s1, %s129
          %s132 = sshll.u32 %s130, 4
          %s133 = int_to_ptr.hbm [resolvable:$true] %s132
          %s134 = sshll.u32 %s126, 4
          %s135 = int_to_ptr.vmem [resolvable:$true] %s134
          %137 = dma.hbm_to_vmem [thread:$0]  %s133, 128, %s135, %s123
        $region24: #{tpu_custom_call.1} parent=19 // pred_fallthru
          _
      $region20: #{tpu_custom_call.1} parent=5 // pred_fallthru
        _
      %p138 = scmp.le.s32.totalorder 1, %s15
      %p139 = scmp.lt.s32.totalorder %s15, 3
      %p140 = pnand %p138, %p139
      %p141 = pneg %p140
      // Predicated region
      $region25: #{tpu_custom_call.1} parent=5 // pred_check
        _
      $region26: #{tpu_custom_call.1} parent=5 // pred_check_branch
        %143 = sbr.rel (%p140) target = $region28
      $region27: #{tpu_custom_call.1} parent=5 // pred_region
        %s144 = ssub.s32 %s15, 1
        // Predicated region
        $region29: #{tpu_custom_call.1} parent=27 // pred_check
          %p145 = pneg %p36
        $region30: #{tpu_custom_call.1} parent=27 // pred_check_branch
          %147 = sbr.rel (%p145) target = $region32
        $region31: #{tpu_custom_call.1} parent=27 // pred_region
          %149 = dma.done [#allocation3], 128
        $region32: #{tpu_custom_call.1} parent=27 // pred_fallthru
          _
        %s150 = sand.u32 %s49, 1
        %s151 = scalar_lea.sflag [#allocation6], %s150
        %s152 = sand.u32 %s49, 1
        %s153 = smul.addr %s152, 8
        %s154 = scalar_lea.vmem [#allocation5], %s153
        // Predicated region
        $region33: #{tpu_custom_call.1} parent=27 // pred_check
          %p155 = pneg %p62
        $region34: #{tpu_custom_call.1} parent=27 // pred_check_branch
          %157 = sbr.rel (%p155) target = $region36
        $region35: #{tpu_custom_call.1} parent=27 // pred_region
          %159 = dma.done %s151, 128
        $region36: #{tpu_custom_call.1} parent=27 // pred_fallthru
          _
        %p160 = pneg %p36
        %p161 = pneg %p33
        %s162 = sand.u32 %s49, 1
        %s163 = scalar_lea.sflag [#allocation6], %s162
        %s164 = sand.u32 %s49, 1
        %s165 = smul.addr %s164, 8
        %s166 = scalar_lea.vmem [#allocation5], %s165
        %p167 = pneg %p62
        %p168 = pneg %p59
        %p169 = pneg %p88
        %p170 = pneg %p85
        %s171 = sand.u32 %s75, 1
        %s172 = scalar_lea.sflag [#allocation4], %s171
        %s173 = sand.u32 %s75, 1
        %s174 = smul.addr %s173, 8
        %s175 = scalar_lea.vmem [#allocation7], %s174
        %v176 = vld [vmem:[%s154] sm:$0xff]
        %v177 = vld [vmem:[#allocation2] sm:$0xff]
        %v178 = vadd.f32 %v176, %v177
        %179 = vst [vmem:[%s175] sm:$0xff] %v178
        %s180 = sand.u32 %s75, 1
        %s181 = scalar_lea.sflag [#allocation4], %s180
        %s182 = sand.u32 %s75, 1
        %s183 = smul.addr %s182, 8
        %s184 = scalar_lea.vmem [#allocation7], %s183
        // Predicated region
        $region37: #{tpu_custom_call.1} parent=27 // pred_check
          %p185 = pneg %p85
        $region38: #{tpu_custom_call.1} parent=27 // pred_check_branch
          %187 = sbr.rel (%p185) target = $region40
        $region39: #{tpu_custom_call.1} parent=27 // pred_region
          %189 = vsyncadd %s181, 0
          %s190 = smul.addr %s20, 8
          %s191 = scalar_lea.hbm %s2, %s190
          %s193 = sshll.u32 %s184, 4
          %s194 = int_to_ptr.vmem [resolvable:$true] %s193
          %s195 = sshll.u32 %s191, 4
          %s196 = int_to_ptr.hbm [resolvable:$true] %s195
          %198 = dma.vmem_to_hbm [thread:$0]  %s194, 128, %s196, %s181
        $region40: #{tpu_custom_call.1} parent=27 // pred_fallthru
          _
      $region28: #{tpu_custom_call.1} parent=5 // pred_fallthru
        _
      %p199 = scmp.le.s32.totalorder 2, %s15
      // Predicated region
      $region41: #{tpu_custom_call.1} parent=5 // pred_check
        %p200 = pneg %p199
      $region42: #{tpu_custom_call.1} parent=5 // pred_check_branch
        %202 = sbr.rel (%p200) target = $region44
      $region43: #{tpu_custom_call.1} parent=5 // pred_region
        %s203 = ssub.s32 %s15, 2
        // Predicated region
        $region45: #{tpu_custom_call.1} parent=43 // pred_check
          %p204 = pneg %p91
        $region46: #{tpu_custom_call.1} parent=43 // pred_check_branch
          %206 = sbr.rel (%p204) target = $region48
        $region47: #{tpu_custom_call.1} parent=43 // pred_region
          %s207 = sand.u32 %s76, 1
          %s208 = scalar_lea.sflag [#allocation4], %s207
          %s209 = sand.u32 %s76, 1
          %s210 = smul.addr %s209, 8
          %s211 = scalar_lea.vmem [#allocation7], %s210
          %213 = dma.done %s208, 128
        $region48: #{tpu_custom_call.1} parent=43 // pred_fallthru
          _
      $region44: #{tpu_custom_call.1} parent=5 // pred_fallthru
        _
    $region6: #{tpu_custom_call.1} parent=1 // loop_footer
      %s19 = sadd.s32 1, %s15
    $region7: #{tpu_custom_call.1} parent=1 // loop_footer_branch
      %14 = sbr.rel target = $region3
    $region8: #{tpu_custom_call.1} parent=1 // loop_exit
      _
    %214 = vsyncpa [#allocation3], 1
    %s215 = scalar_lea.sflag [#allocation3], 1
    %216 = vsyncpa %s215, 1
    %217 = vsyncpa [#allocation6], 1
    %s218 = scalar_lea.sflag [#allocation6], 1
    %219 = vsyncpa %s218, 1
    %220 = vsyncpa [#allocation4], 1
    %s221 = scalar_lea.sflag [#allocation4], 1
    %222 = vsyncpa %s221, 1

// kernel: tpu_custom_call.1
$region0: #{tpu_custom_call.1}
  #allocation0 [shape = 'u32[]', space=smem, size = 0x4, offset = 0x4, fixed_abs, tag = 'smem constant byte address 0x4 - core index']
  #allocation1 [shape = 'u32[72,128]{1,0:T(1,128)}', space=vmem, size = 0x9000, scoped, tag = 'internal scratch']
  %s0 = inlined_call_operand.hbm [shape: bf16[2,8,128], index: 0, kind: input, shape index: {}]
  %s1 = inlined_call_operand.hbm [shape: bf16[128,384], index: 1, kind: input, shape index: {}]
  %s2 = inlined_call_operand.hbm [shape: f32[1,384], index: 2, kind: input, shape index: {}]
  %s3 = inlined_call_operand.hbm [shape: bf16[128,128], index: 3, kind: input, shape index: {}]
  %s4 = inlined_call_operand.vmem [shape: f32[1,128], index: 4, kind: input, shape index: {}]
  %s5 = inlined_call_operand.vmem [shape: f32[1,128], index: 5, kind: input, shape index: {}]
  %s6 = inlined_call_operand.vmem [shape: f32[1,128], index: 6, kind: input, shape index: {}]
  %s7 = inlined_call_operand.hbm [shape: bf16[2,8,128], index: 7, kind: output, shape index: {}]
  %s8 = sld [smem:[#allocation0]]
  $region77: #{tpu_custom_call.1} parent=0
    _
  %s10 = ssub.s32 1, %s8
  %s11 = scalar_select 0, %s10, %s8
  $region1: #{tpu_custom_call.1} parent=0
    #allocation2 [shape = 'u8[4096]{0}', space=vmem, size = 0x1000, scoped, tag = 'input window, operand 0']
    #allocation3 [shape = 's32[2]{0}', space=sflag, size = 0x8, scoped, tag = 'scoped memory for tpu_custom_call.1']
    #allocation4 [shape = 's32[2]{0}', space=sflag, size = 0x8, scoped, tag = 'scoped memory for tpu_custom_call.1']
    #allocation5 [shape = 'u8[98304]{0}', space=vmem, size = 0x18000, scoped, tag = 'input window, operand 1, single buffered']
    #allocation6 [shape = 's32[1]{0}', space=sflag, size = 0x4, scoped, tag = 'scoped memory for tpu_custom_call.1']
    #allocation7 [shape = 'u8[1536]{0}', space=vmem, size = 0x800, scoped, tag = 'input window, operand 2, single buffered']
    #allocation8 [shape = 'u8[32768]{0}', space=vmem, size = 0x8000, scoped, tag = 'input window, operand 3, single buffered']
    #allocation9 [shape = 's32[1]{0}', space=sflag, size = 0x4, scoped, tag = 'scoped memory for tpu_custom_call.1']
    #allocation10 [shape = 'u8[4096]{0}', space=vmem, size = 0x1000, scoped, tag = 'output window, operand 0']
    %12 = vsyncpa [#allocation3], 0
    %s13 = scalar_lea.sflag [#allocation3], 1
    %14 = vsyncpa %s13, 0
    %15 = vsyncpa [#allocation6], 0
    %16 = vsyncpa [#allocation9], 0
    %17 = vsyncpa [#allocation4], 0
    %s18 = scalar_lea.sflag [#allocation4], 1
    %19 = vsyncpa %s18, 0
    loop: start=0, step=1, limit=4
    $region2: #{tpu_custom_call.1} parent=1 // loop_pre_header
      _
    $region3: #{tpu_custom_call.1} parent=1 // loop_header
      %s21 = sphi 0, %s25
      %p22 = scmp.ge.s32.totalorder %s21, 4
      %s31 = sphi 0, %s33
      %s34 = sphi 0, %s31
      %s35 = sphi 0, %s34
      %s51 = sphi 0, %s35
      %s55 = sphi 0, %s55
      %s57 = sphi 0, %s55
      %s58 = sphi 0, %s57
      %s72 = sphi 0, %s58
      %s76 = sphi 0, %s76
      %s78 = sphi 0, %s76
      %s79 = sphi 0, %s78
      %s93 = sphi 0, %s79
      %s97 = sphi 0, %s97
      %s99 = sphi 0, %s97
      %s100 = sphi 0, %s99
      %s114 = sphi 0, %s100
      %s118 = sphi 0, %s118
      %s120 = sphi 0, %s118
      %s121 = sphi 0, %s120
      %s135 = sphi 0, %s121
      %s139 = sphi 0, %s139
      %s141 = sphi 0, %s139
      %s142 = sphi 0, %s141
      %s156 = sphi 0, %s142
      %s160 = sphi 0, %s160
      %s162 = sphi 0, %s160
      %s163 = sphi 0, %s162
      %s177 = sphi 0, %s163
      %s183 = sphi 0, %s185
      %s186 = sphi 0, %s183
      %s187 = sphi 0, %s186
      %s203 = sphi 0, %s187
    $region4: #{tpu_custom_call.1} parent=1 // loop_header_branch
      %24 = sbr.rel (%p22) target = $region8
    $region5: #{tpu_custom_call.1} parent=1 // loop_body
      %s26 = ssub.s32 %s21, 1
      %s27 = ssub.s32 %s21, 2
      %s28 = sadd.s32 %s21, 1
      %s29 = ssub.s32 %s21, %s28
      %p30 = scmp.eq.s32.totalorder %s29, 0
      %s32 = sadd.s32 %s31, 1
      %s33 = scalar_select %p30, %s31, %s32
      %p36 = pneg %p30
      %p37 = scmp.eq.s32.totalorder %s21, 1
      %p38 = por %p36, %p37
      %p39 = scmp.ne.s32.totalorder %s31, %s34
      %p40 = scmp.eq.s32.totalorder %s21, 0
      %p41 = por %p39, %p40
      %p42 = scmp.ne.s32.totalorder %s31, %s34
      %p43 = scmp.eq.s32.totalorder %s26, 1
      %p44 = por %p42, %p43
      %p45 = scmp.ne.s32.totalorder %s34, %s35
      %p46 = scmp.eq.s32.totalorder %s26, 0
      %p47 = por %p45, %p46
      %p48 = scmp.ne.s32.totalorder %s34, %s35
      %p49 = scmp.eq.s32.totalorder %s27, 1
      %p50 = por %p48, %p49
      %p52 = scmp.ne.s32.totalorder %s35, %s51
      %p53 = scmp.eq.s32.totalorder %s27, 0
      %p54 = por %p52, %p53
      %s56 = sadd.s32 %s55, 1
      %p59 = scmp.eq.s32.totalorder %s21, 1
      %p60 = scmp.ne.s32.totalorder %s55, %s57
      %p61 = scmp.eq.s32.totalorder %s21, 0
      %p62 = por %p60, %p61
      %p63 = scmp.ne.s32.totalorder %s55, %s57
      %p64 = scmp.eq.s32.totalorder %s26, 1
      %p65 = por %p63, %p64
      %p66 = scmp.ne.s32.totalorder %s57, %s58
      %p67 = scmp.eq.s32.totalorder %s26, 0
      %p68 = por %p66, %p67
      %p69 = scmp.ne.s32.totalorder %s57, %s58
      %p70 = scmp.eq.s32.totalorder %s27, 1
      %p71 = por %p69, %p70
      %p73 = scmp.ne.s32.totalorder %s58, %s72
      %p74 = scmp.eq.s32.totalorder %s27, 0
      %p75 = por %p73, %p74
      %s77 = sadd.s32 %s76, 1
      %p80 = scmp.eq.s32.totalorder %s21, 1
      %p81 = scmp.ne.s32.totalorder %s76, %s78
      %p82 = scmp.eq.s32.totalorder %s21, 0
      %p83 = por %p81, %p82
      %p84 = scmp.ne.s32.totalorder %s76, %s78
      %p85 = scmp.eq.s32.totalorder %s26, 1
      %p86 = por %p84, %p85
      %p87 = scmp.ne.s32.totalorder %s78, %s79
      %p88 = scmp.eq.s32.totalorder %s26, 0
      %p89 = por %p87, %p88
      %p90 = scmp.ne.s32.totalorder %s78, %s79
      %p91 = scmp.eq.s32.totalorder %s27, 1
      %p92 = por %p90, %p91
      %p94 = scmp.ne.s32.totalorder %s79, %s93
      %p95 = scmp.eq.s32.totalorder %s27, 0
      %p96 = por %p94, %p95
      %s98 = sadd.s32 %s97, 1
      %p101 = scmp.eq.s32.totalorder %s21, 1
      %p102 = scmp.ne.s32.totalorder %s97, %s99
      %p103 = scmp.eq.s32.totalorder %s21, 0
      %p104 = por %p102, %p103
      %p105 = scmp.ne.s32.totalorder %s97, %s99
      %p106 = scmp.eq.s32.totalorder %s26, 1
      %p107 = por %p105, %p106
      %p108 = scmp.ne.s32.totalorder %s99, %s100
      %p109 = scmp.eq.s32.totalorder %s26, 0
      %p110 = por %p108, %p109
      %p111 = scmp.ne.s32.totalorder %s99, %s100
      %p112 = scmp.eq.s32.totalorder %s27, 1
      %p113 = por %p111, %p112
      %p115 = scmp.ne.s32.totalorder %s100, %s114
      %p116 = scmp.eq.s32.totalorder %s27, 0
      %p117 = por %p115, %p116
      %s119 = sadd.s32 %s118, 1
      %p122 = scmp.eq.s32.totalorder %s21, 1
      %p123 = scmp.ne.s32.totalorder %s118, %s120
      %p124 = scmp.eq.s32.totalorder %s21, 0
      %p125 = por %p123, %p124
      %p126 = scmp.ne.s32.totalorder %s118, %s120
      %p127 = scmp.eq.s32.totalorder %s26, 1
      %p128 = por %p126, %p127
      %p129 = scmp.ne.s32.totalorder %s120, %s121
      %p130 = scmp.eq.s32.totalorder %s26, 0
      %p131 = por %p129, %p130
      %p132 = scmp.ne.s32.totalorder %s120, %s121
      %p133 = scmp.eq.s32.totalorder %s27, 1
      %p134 = por %p132, %p133
      %p136 = scmp.ne.s32.totalorder %s121, %s135
      %p137 = scmp.eq.s32.totalorder %s27, 0
      %p138 = por %p136, %p137
      %s140 = sadd.s32 %s139, 1
      %p143 = scmp.eq.s32.totalorder %s21, 1
      %p144 = scmp.ne.s32.totalorder %s139, %s141
      %p145 = scmp.eq.s32.totalorder %s21, 0
      %p146 = por %p144, %p145
      %p147 = scmp.ne.s32.totalorder %s139, %s141
      %p148 = scmp.eq.s32.totalorder %s26, 1
      %p149 = por %p147, %p148
      %p150 = scmp.ne.s32.totalorder %s141, %s142
      %p151 = scmp.eq.s32.totalorder %s26, 0
      %p152 = por %p150, %p151
      %p153 = scmp.ne.s32.totalorder %s141, %s142
      %p154 = scmp.eq.s32.totalorder %s27, 1
      %p155 = por %p153, %p154
      %p157 = scmp.ne.s32.totalorder %s142, %s156
      %p158 = scmp.eq.s32.totalorder %s27, 0
      %p159 = por %p157, %p158
      %s161 = sadd.s32 %s160, 1
      %p164 = scmp.eq.s32.totalorder %s21, 1
      %p165 = scmp.ne.s32.totalorder %s160, %s162
      %p166 = scmp.eq.s32.totalorder %s21, 0
      %p167 = por %p165, %p166
      %p168 = scmp.ne.s32.totalorder %s160, %s162
      %p169 = scmp.eq.s32.totalorder %s26, 1
      %p170 = por %p168, %p169
      %p171 = scmp.ne.s32.totalorder %s162, %s163
      %p172 = scmp.eq.s32.totalorder %s26, 0
      %p173 = por %p171, %p172
      %p174 = scmp.ne.s32.totalorder %s162, %s163
      %p175 = scmp.eq.s32.totalorder %s27, 1
      %p176 = por %p174, %p175
      %p178 = scmp.ne.s32.totalorder %s163, %s177
      %p179 = scmp.eq.s32.totalorder %s27, 0
      %p180 = por %p178, %p179
      %s181 = ssub.s32 %s21, %s28
      %p182 = scmp.eq.s32.totalorder %s181, 0
      %s184 = sadd.s32 %s183, 1
      %s185 = scalar_select %p182, %s183, %s184
      %p188 = pneg %p182
      %p189 = scmp.eq.s32.totalorder %s21, 1
      %p190 = por %p188, %p189
      %p191 = scmp.ne.s32.totalorder %s183, %s186
      %p192 = scmp.eq.s32.totalorder %s21, 0
      %p193 = por %p191, %p192
      %p194 = scmp.ne.s32.totalorder %s183, %s186
      %p195 = scmp.eq.s32.totalorder %s26, 1
      %p196 = por %p194, %p195
      %p197 = scmp.ne.s32.totalorder %s186, %s187
      %p198 = scmp.eq.s32.totalorder %s26, 0
      %p199 = por %p197, %p198
      %p200 = scmp.ne.s32.totalorder %s186, %s187
      %p201 = scmp.eq.s32.totalorder %s27, 1
      %p202 = por %p200, %p201
      %p204 = scmp.ne.s32.totalorder %s187, %s203
      %p205 = scmp.eq.s32.totalorder %s27, 0
      %p206 = por %p204, %p205
      %p207 = scmp.le.s32.totalorder 1, %s21
      %p208 = scmp.lt.s32.totalorder %s21, 3
      %p209 = pnand %p207, %p208
      %p210 = pneg %p209
      // Predicated region
      $region9: #{tpu_custom_call.1} parent=5 // pred_check
        _
      $region10: #{tpu_custom_call.1} parent=5 // pred_check_branch
        %212 = sbr.rel (%p209) target = $region12
      $region11: #{tpu_custom_call.1} parent=5 // pred_region
        %s213 = ssub.s32 %s21, 1
        // Predicated region
        $region13: #{tpu_custom_call.1} parent=11 // pred_check
          %p214 = pneg %p68
        $region14: #{tpu_custom_call.1} parent=11 // pred_check_branch
          %216 = sbr.rel (%p214) target = $region16
        $region15: #{tpu_custom_call.1} parent=11 // pred_region
          %218 = vsyncadd [#allocation6], 0
          %s219 = sshll.u32 %s1, 4
          %s220 = int_to_ptr.hbm [resolvable:$true] %s219
          %s221 = sshll.u32 [#allocation5], 4
          %s222 = int_to_ptr.vmem [resolvable:$true] %s221
          %227 = dma.hbm_to_vmem [thread:$0]  %s220, 3072, %s222, [#allocation6], 192, 192, 12
        $region16: #{tpu_custom_call.1} parent=11 // pred_fallthru
          _
        // Predicated region
        $region17: #{tpu_custom_call.1} parent=11 // pred_check
          %p228 = pneg %p89
        $region18: #{tpu_custom_call.1} parent=11 // pred_check_branch
          %230 = sbr.rel (%p228) target = $region20
        $region19: #{tpu_custom_call.1} parent=11 // pred_region
          %232 = vsyncadd [#allocation6], 0
          %s234 = sshll.u32 %s2, 4
          %s235 = int_to_ptr.hbm [resolvable:$true] %s234
          %s236 = sshll.u32 [#allocation7], 4
          %s237 = int_to_ptr.vmem [resolvable:$true] %s236
          %239 = dma.hbm_to_vmem [thread:$0]  %s235, 48, %s237, [#allocation6]
        $region20: #{tpu_custom_call.1} parent=11 // pred_fallthru
          _
        // Predicated region
        $region21: #{tpu_custom_call.1} parent=11 // pred_check
          %p240 = pneg %p110
        $region22: #{tpu_custom_call.1} parent=11 // pred_check_branch
          %242 = sbr.rel (%p240) target = $region24
        $region23: #{tpu_custom_call.1} parent=11 // pred_region
          %244 = vsyncadd [#allocation9], 0
          %s245 = sshll.u32 %s3, 4
          %s246 = int_to_ptr.hbm [resolvable:$true] %s245
          %s247 = sshll.u32 [#allocation8], 4
          %s248 = int_to_ptr.vmem [resolvable:$true] %s247
          %253 = dma.hbm_to_vmem [thread:$0]  %s246, 1024, %s248, [#allocation9], 64, 64, 4
        $region24: #{tpu_custom_call.1} parent=11 // pred_fallthru
          _
        // Predicated region
        $region25: #{tpu_custom_call.1} parent=11 // pred_check
          %p254 = pneg %p131
        $region26: #{tpu_custom_call.1} parent=11 // pred_check_branch
          %256 = sbr.rel (%p254) target = $region28
        $region27: #{tpu_custom_call.1} parent=11 // pred_region
          _
        $region28: #{tpu_custom_call.1} parent=11 // pred_fallthru
          _
        // Predicated region
        $region29: #{tpu_custom_call.1} parent=11 // pred_check
          %p257 = pneg %p152
        $region30: #{tpu_custom_call.1} parent=11 // pred_check_branch
          %259 = sbr.rel (%p257) target = $region32
        $region31: #{tpu_custom_call.1} parent=11 // pred_region
          _
        $region32: #{tpu_custom_call.1} parent=11 // pred_fallthru
          _
        // Predicated region
        $region33: #{tpu_custom_call.1} parent=11 // pred_check
          %p260 = pneg %p173
        $region34: #{tpu_custom_call.1} parent=11 // pred_check_branch
          %262 = sbr.rel (%p260) target = $region36
        $region35: #{tpu_custom_call.1} parent=11 // pred_region
          _
        $region36: #{tpu_custom_call.1} parent=11 // pred_fallthru
          _
      $region12: #{tpu_custom_call.1} parent=5 // pred_fallthru
        _
      %p263 = scmp.lt.s32.totalorder %s21, 2
      // Predicated region
      $region37: #{tpu_custom_call.1} parent=5 // pred_check
        %p264 = pneg %p263
      $region38: #{tpu_custom_call.1} parent=5 // pred_check_branch
        %266 = sbr.rel (%p264) target = $region40
      $region39: #{tpu_custom_call.1} parent=5 // pred_region
        // Predicated region
        $region41: #{tpu_custom_call.1} parent=39 // pred_check
          %p267 = pneg %p41
        $region42: #{tpu_custom_call.1} parent=39 // pred_check_branch
          %269 = sbr.rel (%p267) target = $region44
        $region43: #{tpu_custom_call.1} parent=39 // pred_region
          %s270 = sand.u32 %s31, 1
          %s271 = scalar_lea.sflag [#allocation3], %s270
          %s272 = sand.u32 %s31, 1
          %s273 = smul.addr %s272, 4
          %s274 = scalar_lea.vmem [#allocation2], %s273
          %276 = vsyncadd %s271, 0
          %s277 = smul.addr %s21, 4
          %s278 = scalar_lea.hbm %s0, %s277
          %s280 = sshll.u32 %s278, 4
          %s281 = int_to_ptr.hbm [resolvable:$true] %s280
          %s282 = sshll.u32 %s274, 4
          %s283 = int_to_ptr.vmem [resolvable:$true] %s282
          %285 = dma.hbm_to_vmem [thread:$0]  %s281, 64, %s283, %s271
        $region44: #{tpu_custom_call.1} parent=39 // pred_fallthru
          _
      $region40: #{tpu_custom_call.1} parent=5 // pred_fallthru
        _
      %p286 = scmp.le.s32.totalorder 1, %s21
      %p287 = scmp.lt.s32.totalorder %s21, 3
      %p288 = pnand %p286, %p287
      %p289 = pneg %p288
      // Predicated region
      $region45: #{tpu_custom_call.1} parent=5 // pred_check
        _
      $region46: #{tpu_custom_call.1} parent=5 // pred_check_branch
        %291 = sbr.rel (%p288) target = $region48
      $region47: #{tpu_custom_call.1} parent=5 // pred_region
        %s292 = ssub.s32 %s21, 1
        %s293 = sand.u32 %s34, 1
        %s294 = scalar_lea.sflag [#allocation3], %s293
        %s295 = sand.u32 %s34, 1
        %s296 = smul.addr %s295, 4
        %s297 = scalar_lea.vmem [#allocation2], %s296
        // Predicated region
        $region49: #{tpu_custom_call.1} parent=47 // pred_check
          %p298 = pneg %p47
        $region50: #{tpu_custom_call.1} parent=47 // pred_check_branch
          %300 = sbr.rel (%p298) target = $region52
        $region51: #{tpu_custom_call.1} parent=47 // pred_region
          %302 = dma.done %s294, 64
        $region52: #{tpu_custom_call.1} parent=47 // pred_fallthru
          _
        // Predicated region
        $region53: #{tpu_custom_call.1} parent=47 // pred_check
          %p303 = pneg %p68
        $region54: #{tpu_custom_call.1} parent=47 // pred_check_branch
          %305 = sbr.rel (%p303) target = $region56
        $region55: #{tpu_custom_call.1} parent=47 // pred_region
          %307 = dma.done [#allocation6], 3072
        $region56: #{tpu_custom_call.1} parent=47 // pred_fallthru
          _
        // Predicated region
        $region57: #{tpu_custom_call.1} parent=47 // pred_check
          %p308 = pneg %p89
        $region58: #{tpu_custom_call.1} parent=47 // pred_check_branch
          %310 = sbr.rel (%p308) target = $region60
        $region59: #{tpu_custom_call.1} parent=47 // pred_region
          %312 = dma.done [#allocation6], 48
        $region60: #{tpu_custom_call.1} parent=47 // pred_fallthru
          _
        // Predicated region
        $region61: #{tpu_custom_call.1} parent=47 // pred_check
          %p313 = pneg %p110
        $region62: #{tpu_custom_call.1} parent=47 // pred_check_branch
          %315 = sbr.rel (%p313) target = $region64
        $region63: #{tpu_custom_call.1} parent=47 // pred_region
          %317 = dma.done [#allocation9], 1024
        $region64: #{tpu_custom_call.1} parent=47 // pred_fallthru
          _
        %s318 = sand.u32 %s34, 1
        %s319 = scalar_lea.sflag [#allocation3], %s318
        %s320 = sand.u32 %s34, 1
        %s321 = smul.addr %s320, 4
        %s322 = scalar_lea.vmem [#allocation2], %s321
        %p323 = pneg %p47
        %p324 = pneg %p44
        %p325 = pneg %p68
        %p326 = pneg %p65
        %p327 = pneg %p89
        %p328 = pneg %p86
        %p329 = pneg %p110
        %p330 = pneg %p107
        %p331 = pneg %p131
        %p332 = pneg %p128
        %p333 = pneg %p152
        %p334 = pneg %p149
        %p335 = pneg %p173
        %p336 = pneg %p170
        %p337 = pneg %p199
        %p338 = pneg %p196
        %s339 = sand.u32 %s186, 1
        %s340 = scalar_lea.sflag [#allocation4], %s339
        %s341 = sand.u32 %s186, 1
        %s342 = smul.addr %s341, 4
        %s343 = scalar_lea.vmem [#allocation10], %s342
        %v345 = vld [vmem:[%s297] sm:$0xf]
        %v346 = vld [vmem:[#allocation5] sm:$0xff]
        %v347 = vld [vmem:[#allocation5 + $0x8] sm:$0xf]
        %v348 = vld [vmem:[#allocation5 + $0xc] sm:$0xff]
        %v349 = vld [vmem:[#allocation5 + $0x14] sm:$0xf]
        %v350 = vld [vmem:[#allocation5 + $0x18] sm:$0xff]
        %v351 = vld [vmem:[#allocation5 + $0x20] sm:$0xf]
        %v352 = vld [vmem:[#allocation5 + $0x24] sm:$0xff]
        %v353 = vld [vmem:[#allocation5 + $0x2c] sm:$0xf]
        %v354 = vld [vmem:[#allocation5 + $0x30] sm:$0xff]
        %v355 = vld [vmem:[#allocation5 + $0x38] sm:$0xf]
        %v356 = vld [vmem:[#allocation5 + $0x3c] sm:$0xff]
        %v357 = vld [vmem:[#allocation5 + $0x44] sm:$0xf]
        %v358 = vld [vmem:[#allocation5 + $0x48] sm:$0xff]
        %v359 = vld [vmem:[#allocation5 + $0x50] sm:$0xf]
        %v360 = vld [vmem:[#allocation5 + $0x54] sm:$0xff]
        %v361 = vld [vmem:[#allocation5 + $0x5c] sm:$0xf]
        %v362 = vld [vmem:[#allocation5 + $0x60] sm:$0xff]
        %v363 = vld [vmem:[#allocation5 + $0x68] sm:$0xf]
        %v364 = vld [vmem:[#allocation5 + $0x6c] sm:$0xff]
        %v365 = vld [vmem:[#allocation5 + $0x74] sm:$0xf]
        %v366 = vld [vmem:[#allocation5 + $0x78] sm:$0xff]
        %v367 = vld [vmem:[#allocation5 + $0x80] sm:$0xf]
        %v368 = vld [vmem:[#allocation5 + $0x84] sm:$0xff]
        %v369 = vld [vmem:[#allocation5 + $0x8c] sm:$0xf]
        %v370 = vld [vmem:[#allocation5 + $0x90] sm:$0xff]
        %v371 = vld [vmem:[#allocation5 + $0x98] sm:$0xf]
        %v372 = vld [vmem:[#allocation5 + $0x9c] sm:$0xff]
        %v373 = vld [vmem:[#allocation5 + $0xa4] sm:$0xf]
        %v374 = vld [vmem:[#allocation5 + $0xa8] sm:$0xff]
        %v375 = vld [vmem:[#allocation5 + $0xb0] sm:$0xf]
        %v376 = vld [vmem:[#allocation5 + $0xb4] sm:$0xff]
        %v377 = vld [vmem:[#allocation5 + $0xbc] sm:$0xf]
        %v378 = vld [vmem:[#allocation7] sm:$0x7]
        %v380 = vperm.slane %v378, 0
        %v381 = vperm.slane %v378, 1
        %v382 = vperm.slane %v378, 2
        %v418 = vunpack.c.l.b16 %v346
        %v419 = vunpack.c.h.b16 %v346
        %v420 = vunpack.c.l.b16 %v347
        %v421 = vunpack.c.l.b16 %v348
        %v422 = vunpack.c.h.b16 %v348
        %v423 = vunpack.c.l.b16 %v349
        %v424 = vunpack.c.l.b16 %v350
        %v425 = vunpack.c.h.b16 %v350
        %v426 = vunpack.c.l.b16 %v351
        %v427 = vunpack.c.l.b16 %v352
        %v428 = vunpack.c.h.b16 %v352
        %v429 = vunpack.c.l.b16 %v353
        %v430 = vunpack.c.l.b16 %v354
        %v431 = vunpack.c.h.b16 %v354
        %v432 = vunpack.c.l.b16 %v355
        %v433 = vunpack.c.l.b16 %v356
        %v434 = vunpack.c.h.b16 %v356
        %v435 = vunpack.c.l.b16 %v357
        %v436 = vunpack.c.l.b16 %v358
        %v437 = vunpack.c.h.b16 %v358
        %v438 = vunpack.c.l.b16 %v359
        %v439 = vunpack.c.l.b16 %v360
        %v440 = vunpack.c.h.b16 %v360
        %v441 = vunpack.c.l.b16 %v361
        %v442 = vunpack.c.l.b16 %v362
        %v443 = vunpack.c.h.b16 %v362
        %v444 = vunpack.c.l.b16 %v363
        %v445 = vunpack.c.l.b16 %v364
        %v446 = vunpack.c.h.b16 %v364
        %v447 = vunpack.c.l.b16 %v365
        %v448 = vunpack.c.l.b16 %v366
        %v449 = vunpack.c.h.b16 %v366
        %v450 = vunpack.c.l.b16 %v367
        %v451 = vunpack.c.l.b16 %v368
        %v452 = vunpack.c.h.b16 %v368
        %v453 = vunpack.c.l.b16 %v369
        %v454 = vunpack.c.l.b16 %v370
        %v455 = vunpack.c.h.b16 %v370
        %v456 = vunpack.c.l.b16 %v371
        %v457 = vunpack.c.l.b16 %v372
        %v458 = vunpack.c.h.b16 %v372
        %v459 = vunpack.c.l.b16 %v373
        %v460 = vunpack.c.l.b16 %v374
        %v461 = vunpack.c.h.b16 %v374
        %v462 = vunpack.c.l.b16 %v375
        %v463 = vunpack.c.l.b16 %v376
        %v464 = vunpack.c.h.b16 %v376
        %v465 = vunpack.c.l.b16 %v377
        %v466 = vpack.c.b16 %v421, %v418
        %v467 = vpack.c.b16 %v422, %v419
        %v468 = vpack.c.b16 %v423, %v420
        %v469 = vpack.c.b16 %v427, %v424
        %v470 = vpack.c.b16 %v428, %v425
        %v471 = vpack.c.b16 %v429, %v426
        %v472 = vpack.c.b16 %v433, %v430
        %v473 = vpack.c.b16 %v434, %v431
        %v474 = vpack.c.b16 %v435, %v432
        %v475 = vpack.c.b16 %v439, %v436
        %v476 = vpack.c.b16 %v440, %v437
        %v477 = vpack.c.b16 %v441, %v438
        %v478 = vpack.c.b16 %v445, %v442
        %v479 = vpack.c.b16 %v446, %v443
        %v480 = vpack.c.b16 %v447, %v444
        %v481 = vpack.c.b16 %v451, %v448
        %v482 = vpack.c.b16 %v452, %v449
        %v483 = vpack.c.b16 %v453, %v450
        %v484 = vpack.c.b16 %v457, %v454
        %v485 = vpack.c.b16 %v458, %v455
        %v486 = vpack.c.b16 %v459, %v456
        %v487 = vpack.c.b16 %v463, %v460
        %v488 = vpack.c.b16 %v464, %v461
        %v489 = vpack.c.b16 %v465, %v462
        %514 = vmatpush.bf16.msra.mxu0 %v487
        %515 = vmatpush.bf16.msra.mxu0 %v484
        %516 = vmatpush.bf16.msra.mxu0 %v481
        %517 = vmatpush.bf16.msra.mxu0 %v478
        %518 = vmatpush.bf16.msra.mxu0 %v475
        %519 = vmatpush.bf16.msra.mxu0 %v472
        %520 = vmatpush.bf16.msra.mxu0 %v469
        %521 = vmatpush.bf16.msra.mxu0 %v466
        %522 = vmatmul.bf16.gmra.mxu0 %v345
        %v523 = vpop.f32.mrf.mxu0
        %v524 = vadd.f32 %v380, %v523
        %v525 = vpop.f32.mrf.mxu0
        %526 = vdwg.mxu0
        %527 = vmatpush.bf16.msra.mxu0 %v488
        %528 = vmatpush.bf16.msra.mxu0 %v485
        %529 = vmatpush.bf16.msra.mxu0 %v482
        %530 = vmatpush.bf16.msra.mxu0 %v479
        %531 = vmatpush.bf16.msra.mxu0 %v476
        %532 = vmatpush.bf16.msra.mxu0 %v473
        %533 = vmatpush.bf16.msra.mxu0 %v470
        %534 = vmatpush.bf16.msra.mxu0 %v467
        %535 = vmatmul.bf16.gmra.mxu0 %v345
        %v536 = vpop.f32.mrf.mxu0
        %v537 = vadd.f32 %v381, %v536
        %v538 = vpop.f32.mrf.mxu0
        %539 = vdwg.mxu0
        %540 = vmatpush.bf16.msra.mxu0 %v489
        %541 = vmatpush.bf16.msra.mxu0 %v486
        %542 = vmatpush.bf16.msra.mxu0 %v483
        %543 = vmatpush.bf16.msra.mxu0 %v480
        %544 = vmatpush.bf16.msra.mxu0 %v477
        %545 = vmatpush.bf16.msra.mxu0 %v474
        %546 = vmatpush.bf16.msra.mxu0 %v471
        %547 = vmatpush.bf16.msra.mxu0 %v468
        %548 = vmatmul.bf16.gmra.mxu0 %v345
        %v549 = vpop.f32.mrf.mxu0
        %v550 = vadd.f32 %v382, %v549
        %v551 = vpop.f32.mrf.mxu0
        %552 = vdwg.mxu0
        %v553 = vpack.c.bf16 %v537, %v524
        %v554 = vpack.c.bf16 %v550, %v550
        %v555 = vlaneseq
        %v556 = vand.u32 %v555, 127
        %vm557 = vcmp.ge.s32.totalorder %v556, 0
        %vm558 = vcmp.lt.s32.totalorder %v556, 16
        %vm559 = vmand %vm557, %vm558
        %vm560 = vmpackc.low %vm559, %vm559
        %v561 = vsel %vm560, %v553, 0
        %v562 = vsel %vm560, %v554, 0
        %v564 = vunpack.c.h.b16 %v553
        %v565 = vpack.c.b16 %v564, %v564
        %567 = vmatpush.bf16.xpose.msra.mxu0 0
        %568 = vmatpush.bf16.xpose.msra.mxu0 0
        %569 = vmatpush.bf16.xpose.msra.mxu0 0
        %570 = vmatpush.bf16.xpose.msra.mxu0 0
        %571 = vmatpush.bf16.xpose.msra.mxu0 0
        %572 = vmatpush.bf16.xpose.msra.mxu0 0
        %573 = vmatpush.bf16.xpose.msra.mxu0 0
        %574 = vmatpush.bf16.xpose.msra.mxu0 %v565
        %575 = vmatmul.bf16.gmra.mxu0 %v561
        %v576 = vpop.f32.mrf.mxu0
        %v577 = vadd.f32 0.0, %v576
        %v578 = vpop.f32.mrf.mxu0
        %579 = vdwg.mxu0
        %vm580 = vcmask 64512
        %v581 = vsel %vm580, %v577, -inf
        %582 = vmax.xlane.f32.xlu0 %v581
        %v583 = vpop.xlane.xlu0 %582
        %v584 = vsub.f32 %v577, %v583
        %v585 = vmul.f32 %v584, 1.442695
        %v586 = vpow.pop %v585
        %v587 = vsel %vm580, %v586, 0.0
        %588 = vadd.xlane.f32.xlu0 %v587
        %v589 = vpop.xlane.xlu0 %588
        %v590 = vrcp.pop %v589
        %v591 = vmul.f32 %v586, %v590
        %v592 = vpack.c.bf16 %v591, %v591
        %vm593 = vcmp.ge.s32.totalorder %v556, 16
        %vm594 = vcmp.lt.s32.totalorder %v556, 32
        %vm595 = vmand %vm593, %vm594
        %vm596 = vmpackc.low %vm595, %vm595
        %v597 = vsel %vm596, %v553, 0
        %v598 = vsel %vm596, %v554, 0
        %599 = vmatpush.bf16.xpose.msra.mxu0 0
        %600 = vmatpush.bf16.xpose.msra.mxu0 0
        %601 = vmatpush.bf16.xpose.msra.mxu0 0
        %602 = vmatpush.bf16.xpose.msra.mxu0 0
        %603 = vmatpush.bf16.xpose.msra.mxu0 0
        %604 = vmatpush.bf16.xpose.msra.mxu0 0
        %605 = vmatpush.bf16.xpose.msra.mxu0 0
        %606 = vmatpush.bf16.xpose.msra.mxu0 %v565
        %607 = vmatmul.bf16.gmra.mxu0 %v597
        %v608 = vpop.f32.mrf.mxu0
        %v609 = vadd.f32 0.0, %v608
        %v610 = vpop.f32.mrf.mxu0
        %611 = vdwg.mxu0
        %v612 = vsel %vm580, %v609, -inf
        %613 = vmax.xlane.f32.xlu0 %v612
        %v614 = vpop.xlane.xlu0 %613
        %v615 = vsub.f32 %v609, %v614
        %v616 = vmul.f32 %v615, 1.442695
        %v617 = vpow.pop %v616
        %v618 = vsel %vm580, %v617, 0.0
        %619 = vadd.xlane.f32.xlu0 %v618
        %v620 = vpop.xlane.xlu0 %619
        %v621 = vrcp.pop %v620
        %v622 = vmul.f32 %v617, %v621
        %v623 = vpack.c.bf16 %v622, %v622
        %v625 = vsel %vm580, %v623, 0
        %vm627 = vcmask 1043456
        %v629 = vsel %vm627, %v598, 0
        %631 = vmatpush.bf16.msra.mxu0 0
        %632 = vmatpush.bf16.msra.mxu0 0
        %633 = vmatpush.bf16.msra.mxu0 0
        %634 = vmatpush.bf16.msra.mxu0 0
        %635 = vmatpush.bf16.msra.mxu0 0
        %636 = vmatpush.bf16.msra.mxu0 0
        %637 = vmatpush.bf16.msra.mxu0 0
        %638 = vmatpush.bf16.msra.mxu0 %v629
        %639 = vmatmul.bf16.gmra.mxu0 %v625
        %v640 = vpop.f32.mrf.mxu0
        %v641 = vadd.f32 0.0, %v640
        %v642 = vpop.f32.mrf.mxu0
        %643 = vdwg.mxu0
        %v645 = vsel %vm580, %v592, 0
        %v648 = vsel %vm627, %v562, 0
        %650 = vmatpush.bf16.msra.mxu0 0
        %651 = vmatpush.bf16.msra.mxu0 0
        %652 = vmatpush.bf16.msra.mxu0 0
        %653 = vmatpush.bf16.msra.mxu0 0
        %654 = vmatpush.bf16.msra.mxu0 0
        %655 = vmatpush.bf16.msra.mxu0 0
        %656 = vmatpush.bf16.msra.mxu0 0
        %657 = vmatpush.bf16.msra.mxu0 %v648
        %658 = vmatmul.bf16.gmra.mxu0 %v645
        %v659 = vpop.f32.mrf.mxu0
        %v660 = vadd.f32 %v641, %v659
        %v661 = vpop.f32.mrf.mxu0
        %662 = vdwg.mxu0
        %v663 = vpack.c.bf16 %v660, %v660
        %v664 = vld [vmem:[#allocation8] sm:$0xf]
        %v665 = vld [vmem:[#allocation8 + $0x4] sm:$0xf]
        %v666 = vld [vmem:[#allocation8 + $0x8] sm:$0xf]
        %v667 = vld [vmem:[#allocation8 + $0xc] sm:$0xf]
        %v668 = vld [vmem:[#allocation8 + $0x10] sm:$0xf]
        %v669 = vld [vmem:[#allocation8 + $0x14] sm:$0xf]
        %v670 = vld [vmem:[#allocation8 + $0x18] sm:$0xf]
        %v671 = vld [vmem:[#allocation8 + $0x1c] sm:$0xf]
        %v672 = vld [vmem:[#allocation8 + $0x20] sm:$0xf]
        %v673 = vld [vmem:[#allocation8 + $0x24] sm:$0xf]
        %v674 = vld [vmem:[#allocation8 + $0x28] sm:$0xf]
        %v675 = vld [vmem:[#allocation8 + $0x2c] sm:$0xf]
        %v676 = vld [vmem:[#allocation8 + $0x30] sm:$0xf]
        %v677 = vld [vmem:[#allocation8 + $0x34] sm:$0xf]
        %v678 = vld [vmem:[#allocation8 + $0x38] sm:$0xf]
        %v679 = vld [vmem:[#allocation8 + $0x3c] sm:$0xf]
        %v680 = vld [vmem:[%s4] sm:$0x1]
        %v682 = vperm.slane %v680, 0
        %v700 = vunpack.c.l.b16 %v664
        %v701 = vunpack.c.l.b16 %v665
        %v702 = vunpack.c.l.b16 %v666
        %v703 = vunpack.c.l.b16 %v667
        %v704 = vunpack.c.l.b16 %v668
        %v705 = vunpack.c.l.b16 %v669
        %v706 = vunpack.c.l.b16 %v670
        %v707 = vunpack.c.l.b16 %v671
        %v708 = vunpack.c.l.b16 %v672
        %v709 = vunpack.c.l.b16 %v673
        %v710 = vunpack.c.l.b16 %v674
        %v711 = vunpack.c.l.b16 %v675
        %v712 = vunpack.c.l.b16 %v676
        %v713 = vunpack.c.l.b16 %v677
        %v714 = vunpack.c.l.b16 %v678
        %v715 = vunpack.c.l.b16 %v679
        %v716 = vpack.c.b16 %v701, %v700
        %v717 = vpack.c.b16 %v703, %v702
        %v718 = vpack.c.b16 %v705, %v704
        %v719 = vpack.c.b16 %v707, %v706
        %v720 = vpack.c.b16 %v709, %v708
        %v721 = vpack.c.b16 %v711, %v710
        %v722 = vpack.c.b16 %v713, %v712
        %v723 = vpack.c.b16 %v715, %v714
        %732 = vmatpush.bf16.msra.mxu0 %v723
        %733 = vmatpush.bf16.msra.mxu0 %v722
        %734 = vmatpush.bf16.msra.mxu0 %v721
        %735 = vmatpush.bf16.msra.mxu0 %v720
        %736 = vmatpush.bf16.msra.mxu0 %v719
        %737 = vmatpush.bf16.msra.mxu0 %v718
        %738 = vmatpush.bf16.msra.mxu0 %v717
        %739 = vmatpush.bf16.msra.mxu0 %v716
        %740 = vmatmul.bf16.gmra.mxu0 %v663
        %v741 = vpop.f32.mrf.mxu0
        %v742 = vadd.f32 %v682, %v741
        %v743 = vpop.f32.mrf.mxu0
        %744 = vdwg.mxu0
        %v745 = vunpack.c.l.bf16 %v345
        %v746 = vadd.f32 %v742, %v745
        %v747 = vld [vmem:[%s5] sm:$0x1]
        %v748 = vld [vmem:[%s6] sm:$0x1]
        %749 = vadd.xlane.f32.xlu0 %v746
        %v750 = vpop.xlane.xlu0 %749
        %v751 = vmul.f32 %v750, 0.03125
        %v752 = vsub.f32 %v746, %v751
        %v753 = vsel %vm594, %v752, 0.0
        %v754 = vmul.f32 %v753, %v753
        %755 = vadd.xlane.f32.xlu0 %v754
        %v756 = vpop.xlane.xlu0 %755
        %v757 = vmul.f32 %v756, 0.03125
        %v758 = vadd.f32 %v757, 1e-12
        %v759 = vrsqrt.pop %v758
        %v760 = vmul.f32 %v759, %v758
        %v761 = vmul.f32 %v760, %v759
        %v762 = vmul.f32 0.5, %v761
        %v763 = vsub.f32 1.5, %v762
        %v764 = vmul.f32 %v759, %v763
        %vm765 = vweird.f32 %v758
        %vm766 = vweird.f32 %v759
        %vm767 = vmor %vm765, %vm766
        %v768 = vsel %vm767, %v759, %v764
        %v769 = vmul.f32 %v753, %v768
        %v771 = vperm.slane %v747, 0
        %v773 = vmul.f32 %v769, %v771
        %v775 = vperm.slane %v748, 0
        %v777 = vadd.f32 %v773, %v775
        %v778 = vpack.c.bf16 %v777, %v777
        %779 = vst [vmem:[%s343] sm:$0xf] %v778
        %s780 = sand.u32 %s186, 1
        %s781 = scalar_lea.sflag [#allocation4], %s780
        %s782 = sand.u32 %s186, 1
        %s783 = smul.addr %s782, 4
        %s784 = scalar_lea.vmem [#allocation10], %s783
        // Predicated region
        $region65: #{tpu_custom_call.1} parent=47 // pred_check
          %p785 = pneg %p196
        $region66: #{tpu_custom_call.1} parent=47 // pred_check_branch
          %787 = sbr.rel (%p785) target = $region68
        $region67: #{tpu_custom_call.1} parent=47 // pred_region
          %789 = vsyncadd %s781, 0
          %s790 = smul.addr %s26, 4
          %s791 = scalar_lea.hbm %s7, %s790
          %s793 = sshll.u32 %s784, 4
          %s794 = int_to_ptr.vmem [resolvable:$true] %s793
          %s795 = sshll.u32 %s791, 4
          %s796 = int_to_ptr.hbm [resolvable:$true] %s795
          %798 = dma.vmem_to_hbm [thread:$0]  %s794, 64, %s796, %s781
        $region68: #{tpu_custom_call.1} parent=47 // pred_fallthru
          _
      $region48: #{tpu_custom_call.1} parent=5 // pred_fallthru
        _
      %p799 = scmp.le.s32.totalorder 2, %s21
      // Predicated region
      $region69: #{tpu_custom_call.1} parent=5 // pred_check
        %p800 = pneg %p799
      $region70: #{tpu_custom_call.1} parent=5 // pred_check_branch
        %802 = sbr.rel (%p800) target = $region72
      $region71: #{tpu_custom_call.1} parent=5 // pred_region
        %s803 = ssub.s32 %s21, 2
        // Predicated region
        $region73: #{tpu_custom_call.1} parent=71 // pred_check
          %p804 = pneg %p202
        $region74: #{tpu_custom_call.1} parent=71 // pred_check_branch
          %806 = sbr.rel (%p804) target = $region76
        $region75: #{tpu_custom_call.1} parent=71 // pred_region
          %s807 = sand.u32 %s187, 1
          %s808 = scalar_lea.sflag [#allocation4], %s807
          %s809 = sand.u32 %s187, 1
          %s810 = smul.addr %s809, 4
          %s811 = scalar_lea.vmem [#allocation10], %s810
          %813 = dma.done %s808, 64
        $region76: #{tpu_custom_call.1} parent=71 // pred_fallthru
          _
      $region72: #{tpu_custom_call.1} parent=5 // pred_fallthru
        _
    $region6: #{tpu_custom_call.1} parent=1 // loop_footer
      %s25 = sadd.s32 1, %s21
    $region7: #{tpu_custom_call.1} parent=1 // loop_footer_branch
      %20 = sbr.rel target = $region3
    $region8: #{tpu_custom_call.1} parent=1 // loop_exit
      _
    %814 = vsyncpa [#allocation3], 1
    %s815 = scalar_lea.sflag [#allocation3], 1
    %816 = vsyncpa %s815, 1
    %817 = vsyncpa [#allocation6], 1
    %818 = vsyncpa [#allocation9], 1
    %819 = vsyncpa [#allocation4], 1
    %s820 = scalar_lea.sflag [#allocation4], 1
    %821 = vsyncpa %s820, 1

</llo_original>
